<compile_context>
chip_gen: v7x
topology: tpu7x:2x2x1
jax: 0.10.0
libtpu: 0.0.40
codegen_flags: <defaults>
</compile_context>

<pallas_src>
import jax
import jax.numpy as jnp
from jax import lax
from jax.experimental import pallas as pl
from jax.experimental.pallas import tpu as pltpu

EMBED = 32          # embed_size
HEADS = 4           # heads
HEAD_DIM = EMBED // HEADS
FF_EXPANSION = 4    # forward_expansion
FF_HIDDEN = FF_EXPANSION * EMBED
EPS = 1e-5          # nn.LayerNorm default eps
NEG = -1e20         # masked_fill value in the reference


# ---------------------------------------------------------------- kernel math
def _layernorm(x, g, b):
    mu = jnp.mean(x, axis=-1, keepdims=True)
    var = jnp.mean((x - mu) ** 2, axis=-1, keepdims=True)
    return (x - mu) * lax.rsqrt(var + EPS) * g + b


def _unpack_consts(c, rk):
    """Slice the packed head-block constants for key-length rk (see _make_consts)."""
    e = EMBED
    hrk = HEADS * rk
    kmask = c[0:e, 0:hrk]                              # (E, H*Rk)
    vmask = c[e:e + hrk, 0:e]                          # (H*Rk, E)
    sum_map = c[e + hrk:e + 2 * hrk, 0:HEADS]          # (H*Rk, H)
    expand = c[e + 2 * hrk:e + 2 * hrk + HEADS, 0:hrk]  # (H, H*Rk)
    return kmask, vmask, sum_map, expand


def _attention(q, k, v, bias, kmask, vmask, sum_map, expand_map):
    """All-head attention with heads laid out along lanes (no per-head loop).

    q:    (Lq, E)  softmax 1/sqrt(E) scale already folded into Wq.
    k, v: (Rk, E)
    bias: (Lq, H*Rk) additive f32 mask bias (0 keep / NEG masked), head-tiled.
    Returns per-head contexts concatenated along lanes: (Lq, E).
    """
    kt_block = jnp.tile(k.T, (1, HEADS)) * kmask        # (E,   H*Rk)
    v_block = jnp.tile(v, (HEADS, 1)) * vmask           # (H*Rk, E)

    s = jnp.dot(q, kt_block, preferred_element_type=jnp.float32) + bias
    # softmax is invariant to a per-row shift -> one global lane-max suffices
    m = jnp.max(s, axis=-1, keepdims=True)
    p = jnp.exp(s - m)
    # skinny per-head row sums instead of a quadratic block-diag ones matmul
    denom_h = jnp.dot(p, sum_map, preferred_element_type=jnp.float32)       # (Lq, H)
    denom = jnp.dot(denom_h, expand_map, preferred_element_type=jnp.float32)  # (Lq, H*Rk)
    # TODO(synk): a fully-masked (row, head) gives denom == 0 -> inf/NaN here,
    # while torch softmax over all -1e20 logits returns uniform weights.
    a = p * pl.reciprocal(denom, approx=True)           # EUP vrcp
    return jnp.dot(a, v_block, preferred_element_type=jnp.float32)          # (Lq, E)


def decoder_block_kernel(x_ref, val_ref, key_ref, trg_bias_ref, src_bias_ref,
                         w_ref, wff2_ref, vb_ref, cself_ref, ccross_ref,
                         out_ref):
    E = EMBED
    Lq = x_ref.shape[1]
    Lk = val_ref.shape[1]

    x = x_ref[0]                          # (Lq, E)
    xv = val_ref[0]                       # (Lk, E)
    xk = key_ref[0]                       # (Lk, E)
    trg_bias = trg_bias_ref[0]            # (Lq, H*Lq)
    src_bias = src_bias_ref[0]            # (Lq, H*Lk)

    # packed weight slab: [wqkv1 | wo1 | wq2 | wk2 | wv2 | wo2 | wff1]
    w = w_ref[...]                        # (E, 12E)
    wqkv1 = w[:, 0:3 * E]
    wo1 = w[:, 3 * E:4 * E]
    wq2 = w[:, 4 * E:5 * E]
    wk2 = w[:, 5 * E:6 * E]
    wv2 = w[:, 6 * E:7 * E]
    wo2 = w[:, 7 * E:8 * E]
    wff1 = w[:, 8 * E:12 * E]

    # packed small vectors (rows 0..8, first E lanes) + FFN bias1 (row 9)
    vb = vb_ref[...]                      # (10, FF_HIDDEN)
    bo1, g0, b0 = vb[0:1, 0:E], vb[1:2, 0:E], vb[2:3, 0:E]
    bo2, g1, b1 = vb[3:4, 0:E], vb[4:5, 0:E], vb[5:6, 0:E]
    g2, b2, bff2 = vb[6:7, 0:E], vb[7:8, 0:E], vb[8:9, 0:E]
    bff1 = vb[9:10, :]                    # (1, FF_HIDDEN)

    # hoisted head-block-diagonal constants (built once in the wrapper)
    km_s, vm_s, sm_s, ex_s = _unpack_consts(cself_ref[...], Lq)
    km_c, vm_c, sm_c, ex_c = _unpack_consts(ccross_ref[...], Lk)

    # ---- masked self-attention over x (trg mask); fused QKV projection ------
    qkv = jnp.dot(x, wqkv1, preferred_element_type=jnp.float32)
    ctx1 = _attention(qkv[:, 0:E], qkv[:, E:2 * E], qkv[:, 2 * E:3 * E],
                      trg_bias, km_s, vm_s, sm_s, ex_s)
    attn1 = jnp.dot(ctx1, wo1, preferred_element_type=jnp.float32) + bo1
    # dropout is identity in eval mode
    query = _layernorm(attn1 + x, g0, b0)

    # ---- TransformerBlock(value, key, query, src_mask) ----------------------
    q2 = jnp.dot(query, wq2, preferred_element_type=jnp.float32)
    k2 = jnp.dot(xk, wk2, preferred_element_type=jnp.float32)
    v2 = jnp.dot(xv, wv2, preferred_element_type=jnp.float32)
    ctx2 = _attention(q2, k2, v2, src_bias, km_c, vm_c, sm_c, ex_c)
    attn2 = jnp.dot(ctx2, wo2, preferred_element_type=jnp.float32) + bo2
    xb = _layernorm(attn2 + query, g1, b1)

    h = jnp.dot(xb, wff1, preferred_element_type=jnp.float32) + bff1
    h = jnp.maximum(h, 0.0)
    ff = jnp.dot(h, wff2_ref[...], preferred_element_type=jnp.float32) + bff2
    out_ref[0] = _layernorm(ff + xb, g2, b2)


# ---------------------------------------------------------------- wrapper
def _mask_bias(mask):
    """(N, A, B) mask (nonzero == keep) -> (N, A, HEADS*B) f32 additive bias."""
    bias = jnp.where(mask != 0, 0.0, NEG).astype(jnp.float32)
    return jnp.tile(bias, (1, 1, HEADS))


def _make_consts(rk):
    """Pack the head-block-diagonal constants for key-length rk into one array.

    Rows: [0, E)             kmask      (E, H*rk)
          [E, E+H*rk)        vmask      (H*rk, E)
          [E+H*rk, E+2H*rk)  sum_map    (H*rk, HEADS)
          [.., ..+HEADS)     expand_map (HEADS, H*rk)
    Lanes are padded to max(E, H*rk)."""
    hrk = HEADS * rk
    width = max(EMBED, hrk)
    e_ids = jnp.arange(EMBED) // HEAD_DIM            # head of each embed lane
    k_ids = jnp.arange(hrk) // rk                    # head of each tiled key row
    kmask = (e_ids[:, None] == k_ids[None, :]).astype(jnp.float32)    # (E, hrk)
    vmask = kmask.T                                                   # (hrk, E)
    sum_map = (k_ids[:, None] == jnp.arange(HEADS)[None, :]).astype(jnp.float32)
    expand = sum_map.T                                                # (H, hrk)

    def pad(a):
        return jnp.pad(a, ((0, 0), (0, width - a.shape[1])))

    return jnp.concatenate([pad(kmask), pad(vmask), pad(sum_map), pad(expand)],
                           axis=0)


def decoder_block(x, value, key, src_mask, trg_mask, weights):
    N, Lq, E = x.shape
    Lk = value.shape[1]
    w_slab, wff2, vb = weights

    trg_bias = _mask_bias(trg_mask)          # (N, Lq, H*Lq)
    src_bias = _mask_bias(src_mask)          # (N, Lq, H*Lk)
    consts_self = _make_consts(Lq)
    consts_cross = consts_self if Lk == Lq else _make_consts(Lk)

    def batch_spec(a, b_shape):
        return pl.BlockSpec(b_shape, lambda b: (b, 0, 0))

    def whole_spec(a):
        return pl.BlockSpec(a.shape, lambda b: (0, 0))

    out = pl.pallas_call(
        decoder_block_kernel,
        out_shape=jax.ShapeDtypeStruct((N, Lq, E), jnp.float32),
        grid=(N,),
        in_specs=[
            batch_spec(x, (1, Lq, E)),
            batch_spec(value, (1, Lk, E)),
            batch_spec(key, (1, Lk, E)),
            batch_spec(trg_bias, (1, Lq, HEADS * Lq)),
            batch_spec(src_bias, (1, Lq, HEADS * Lk)),
            whole_spec(w_slab),
            whole_spec(wff2),
            whole_spec(vb),
            whole_spec(consts_self),
            whole_spec(consts_cross),
        ],
        out_specs=pl.BlockSpec((1, Lq, E), lambda b: (b, 0, 0)),
        compiler_params=pltpu.CompilerParams(
            dimension_semantics=("parallel",),
            vmem_limit_bytes=32 * 1024 * 1024),
    )(x, value, key, trg_bias, src_bias,
      w_slab, wff2, vb, consts_self, consts_cross)
    return out


# ---------------------------------------------------------------- params
def make_params(rng):
    """Raw (unfused, unscaled) parameters mirroring the PyTorch module."""
    ks = jax.random.split(rng, 12)
    hd = HEAD_DIM

    def lin_w(k, out_f, in_f):               # PyTorch Linear weight (out, in)
        bound = 1.0 / (in_f ** 0.5)
        return jax.random.uniform(k, (out_f, in_f), jnp.float32, -bound, bound)

    def lin_b(k, out_f, in_f):
        bound = 1.0 / (in_f ** 0.5)
        return jax.random.uniform(k, (1, out_f), jnp.float32, -bound, bound)

    def blockdiag(w_hd):                     # (hd, hd) torch weight -> (E, E) [in,out]
        return jnp.kron(jnp.eye(HEADS, dtype=jnp.float32), w_hd.T)

    wq1 = blockdiag(lin_w(ks[0], hd, hd))
    wk1 = blockdiag(lin_w(ks[1], hd, hd))
    wv1 = blockdiag(lin_w(ks[2], hd, hd))
    wo1 = lin_w(ks[3], EMBED, EMBED).T
    bo1 = lin_b(ks[3], EMBED, EMBED)
    g0 = jnp.ones((1, EMBED), jnp.float32)
    b0 = jnp.zeros((1, EMBED), jnp.float32)
    wq2 = blockdiag(lin_w(ks[4], hd, hd))
    wk2 = blockdiag(lin_w(ks[5], hd, hd))
    wv2 = blockdiag(lin_w(ks[6], hd, hd))
    wo2 = lin_w(ks[7], EMBED, EMBED).T
    bo2 = lin_b(ks[7], EMBED, EMBED)
    g1 = jnp.ones((1, EMBED), jnp.float32)
    b1 = jnp.zeros((1, EMBED), jnp.float32)
    g2 = jnp.ones((1, EMBED), jnp.float32)
    b2 = jnp.zeros((1, EMBED), jnp.float32)
    wff1 = lin_w(ks[8], FF_HIDDEN, EMBED).T
    bff1 = lin_b(ks[9], FF_HIDDEN, EMBED)
    wff2 = lin_w(ks[10], EMBED, FF_HIDDEN).T
    bff2 = lin_b(ks[11], EMBED, FF_HIDDEN)

    return [wq1, wk1, wv1, wo1, bo1, g0, b0,
            wq2, wk2, wv2, wo2, bo2, g1, b1, g2, b2,
            wff1, bff1, wff2, bff2]


def pack_weights(raw):
    """Fuse QKV, fold the softmax scale into Wq, and pack into 3 operands."""
    (wq1, wk1, wv1, wo1, bo1, g0, b0,
     wq2, wk2, wv2, wo2, bo2, g1, b1, g2, b2,
     wff1, bff1, wff2, bff2) = raw
    scale = 1.0 / (EMBED ** 0.5)
    wqkv1 = jnp.concatenate([wq1 * scale, wk1, wv1], axis=1)           # (E, 3E)
    w_slab = jnp.concatenate(
        [wqkv1, wo1, wq2 * scale, wk2, wv2, wo2, wff1], axis=1)        # (E, 12E)
    vecs = jnp.concatenate([bo1, g0, b0, bo2, g1, b1, g2, b2, bff2], axis=0)
    vecs = jnp.pad(vecs, ((0, 0), (0, FF_HIDDEN - EMBED)))             # (9, 4E)
    vb = jnp.concatenate([vecs, bff1], axis=0)                         # (10, 4E)
    return [w_slab, wff2, vb]


# ---------------------------------------------------------------- pure-JAX ref
def reference(x, value, key, src_mask, trg_mask, w):
    (wq1, wk1, wv1, wo1, bo1, g0, b0,
     wq2, wk2, wv2, wo2, bo2, g1, b1, g2, b2,
     wff1, bff1, wff2, bff2) = w

    def ln(t, g, b):
        mu = t.mean(-1, keepdims=True)
        var = ((t - mu) ** 2).mean(-1, keepdims=True)
        return (t - mu) / jnp.sqrt(var + EPS) * g + b

    def mha(q_in, k_in, v_in, mask, wq, wk, wv, wo, bo):
        q = (q_in @ wq).reshape(q_in.shape[0], q_in.shape[1], HEADS, HEAD_DIM)
        k = (k_in @ wk).reshape(k_in.shape[0], k_in.shape[1], HEADS, HEAD_DIM)
        v = (v_in @ wv).reshape(v_in.shape[0], v_in.shape[1], HEADS, HEAD_DIM)
        e = jnp.einsum("nqhd,nkhd->nhqk", q, k)
        e = jnp.where(mask[:, None, :, :] == 0.0, NEG, e)
        a = jax.nn.softmax(e / (EMBED ** 0.5), axis=-1)
        o = jnp.einsum("nhqk,nkhd->nqhd", a, v).reshape(
            q_in.shape[0], q_in.shape[1], EMBED)
        return o @ wo + bo

    attn = mha(x, x, x, trg_mask, wq1, wk1, wv1, wo1, bo1)
    query = ln(attn + x, g0, b0)
    attn2 = mha(query, key, value, src_mask, wq2, wk2, wv2, wo2, bo2)
    xb = ln(attn2 + query, g1, b1)
    ff = jnp.maximum(xb @ wff1 + bff1, 0.0) @ wff2 + bff2
    return ln(ff + xb, g2, b2)


# ---------------------------------------------------------------- main
if __name__ == "__main__":
    N, LQ, LK = 2, 8, 8
    rng = jax.random.PRNGKey(0)
    k_x, k_v, k_k, k_p = jax.random.split(rng, 4)

    x = jax.random.normal(k_x, (N, LQ, EMBED), jnp.float32)
    value = jax.random.normal(k_v, (N, LK, EMBED), jnp.float32)
    key = jax.random.normal(k_k, (N, LK, EMBED), jnp.float32)

    # trg_mask: causal lower-triangular; src_mask: all ones (no padding)
    trg_mask = jnp.broadcast_to(
        jnp.tril(jnp.ones((LQ, LQ), jnp.float32)), (N, LQ, LQ))
    src_mask = jnp.ones((N, LQ, LK), jnp.float32)

    raw = make_params(k_p)
    packed = pack_weights(raw)

    out = decoder_block(x, value, key, src_mask, trg_mask, packed)
    out = jax.block_until_ready(out)

    ref = reference(x, value, key, src_mask, trg_mask, raw)
    assert out.shape == (N, LQ, EMBED)
    # tolerance slightly looser than 1e-4 to cover the EUP approx reciprocal
    assert jnp.allclose(out, ref, rtol=2e-3, atol=2e-3), (
        float(jnp.max(jnp.abs(out - ref))))

    print("KERNEL_OK")
</pallas_src>

<mosaic_0001>
module attributes {stable_mosaic.version = 11 : i64} {
  func.func @decoder_block_kernel(%arg0: i32, %arg1: memref<1x8x32xf32, #tpu.memory_space<vmem>>, %arg2: memref<1x8x32xf32, #tpu.memory_space<vmem>>, %arg3: memref<1x8x32xf32, #tpu.memory_space<vmem>>, %arg4: memref<1x8x32xf32, #tpu.memory_space<vmem>>, %arg5: memref<1x8x32xf32, #tpu.memory_space<vmem>>, %arg6: memref<32x384xf32, #tpu.memory_space<vmem>>, %arg7: memref<128x32xf32, #tpu.memory_space<vmem>>, %arg8: memref<10x128xf32, #tpu.memory_space<vmem>>, %arg9: memref<100x32xf32, #tpu.memory_space<vmem>>, %arg10: memref<100x32xf32, #tpu.memory_space<vmem>>, %arg11: memref<1x8x32xf32, #tpu.memory_space<vmem>>) attributes {dimension_semantics = [#tpu.dimension_semantics<parallel>], iteration_bounds = array<i64: 2>, scalar_prefetch = 0 : i64, scratch_operands = 0 : i64, tpu.core_type = #tpu.core_type<tc>, window_params = [{transform_indices = @transform_0, window_bounds = array<i64: 1, 8, 32>}, {transform_indices = @transform_1, window_bounds = array<i64: 1, 8, 32>}, {transform_indices = @transform_2, window_bounds = array<i64: 1, 8, 32>}, {transform_indices = @transform_3, window_bounds = array<i64: 1, 8, 32>}, {transform_indices = @transform_4, window_bounds = array<i64: 1, 8, 32>}, {pipeline_mode = #tpu.pipeline_mode<synchronous>, transform_indices = @transform_5, window_bounds = array<i64: 32, 384>}, {pipeline_mode = #tpu.pipeline_mode<synchronous>, transform_indices = @transform_6, window_bounds = array<i64: 128, 32>}, {pipeline_mode = #tpu.pipeline_mode<synchronous>, transform_indices = @transform_7, window_bounds = array<i64: 10, 128>}, {pipeline_mode = #tpu.pipeline_mode<synchronous>, transform_indices = @transform_8, window_bounds = array<i64: 100, 32>}, {pipeline_mode = #tpu.pipeline_mode<synchronous>, transform_indices = @transform_9, window_bounds = array<i64: 100, 32>}, {transform_indices = @transform_10, window_bounds = array<i64: 1, 8, 32>}]} {
    %c0 = arith.constant 0 : index
    %c0_0 = arith.constant 0 : index
    %c0_1 = arith.constant 0 : index
    %0 = vector.load %arg1[%c0, %c0_0, %c0_1] : memref<1x8x32xf32, #tpu.memory_space<vmem>>, vector<1x8x32xf32>
    %1 = vector.shape_cast %0 : vector<1x8x32xf32> to vector<8x32xf32>
    %c0_2 = arith.constant 0 : index
    %c0_3 = arith.constant 0 : index
    %c0_4 = arith.constant 0 : index
    %2 = vector.load %arg2[%c0_2, %c0_3, %c0_4] : memref<1x8x32xf32, #tpu.memory_space<vmem>>, vector<1x8x32xf32>
    %3 = vector.shape_cast %2 : vector<1x8x32xf32> to vector<8x32xf32>
    %c0_5 = arith.constant 0 : index
    %c0_6 = arith.constant 0 : index
    %c0_7 = arith.constant 0 : index
    %4 = vector.load %arg3[%c0_5, %c0_6, %c0_7] : memref<1x8x32xf32, #tpu.memory_space<vmem>>, vector<1x8x32xf32>
    %5 = vector.shape_cast %4 : vector<1x8x32xf32> to vector<8x32xf32>
    %c0_8 = arith.constant 0 : index
    %c0_9 = arith.constant 0 : index
    %c0_10 = arith.constant 0 : index
    %6 = vector.load %arg4[%c0_8, %c0_9, %c0_10] : memref<1x8x32xf32, #tpu.memory_space<vmem>>, vector<1x8x32xf32>
    %7 = vector.shape_cast %6 : vector<1x8x32xf32> to vector<8x32xf32>
    %c0_11 = arith.constant 0 : index
    %c0_12 = arith.constant 0 : index
    %c0_13 = arith.constant 0 : index
    %8 = vector.load %arg5[%c0_11, %c0_12, %c0_13] : memref<1x8x32xf32, #tpu.memory_space<vmem>>, vector<1x8x32xf32>
    %9 = vector.shape_cast %8 : vector<1x8x32xf32> to vector<8x32xf32>
    %c0_14 = arith.constant 0 : index
    %c0_15 = arith.constant 0 : index
    %10 = vector.load %arg6[%c0_14, %c0_15] : memref<32x384xf32, #tpu.memory_space<vmem>>, vector<32x384xf32>
    %11 = vector.extract_strided_slice %10 {offsets = [0, 0], sizes = [32, 96], strides = [1, 1]} : vector<32x384xf32> to vector<32x96xf32>
    %12 = vector.extract_strided_slice %10 {offsets = [0, 96], sizes = [32, 32], strides = [1, 1]} : vector<32x384xf32> to vector<32x32xf32>
    %13 = vector.extract_strided_slice %10 {offsets = [0, 128], sizes = [32, 32], strides = [1, 1]} : vector<32x384xf32> to vector<32x32xf32>
    %14 = vector.extract_strided_slice %10 {offsets = [0, 160], sizes = [32, 32], strides = [1, 1]} : vector<32x384xf32> to vector<32x32xf32>
    %15 = vector.extract_strided_slice %10 {offsets = [0, 192], sizes = [32, 32], strides = [1, 1]} : vector<32x384xf32> to vector<32x32xf32>
    %16 = vector.extract_strided_slice %10 {offsets = [0, 224], sizes = [32, 32], strides = [1, 1]} : vector<32x384xf32> to vector<32x32xf32>
    %17 = vector.extract_strided_slice %10 {offsets = [0, 256], sizes = [32, 128], strides = [1, 1]} : vector<32x384xf32> to vector<32x128xf32>
    %c0_16 = arith.constant 0 : index
    %c0_17 = arith.constant 0 : index
    %18 = vector.load %arg8[%c0_16, %c0_17] : memref<10x128xf32, #tpu.memory_space<vmem>>, vector<10x128xf32>
    %19 = vector.extract_strided_slice %18 {offsets = [0, 0], sizes = [1, 32], strides = [1, 1]} : vector<10x128xf32> to vector<1x32xf32>
    %20 = vector.extract_strided_slice %18 {offsets = [1, 0], sizes = [1, 32], strides = [1, 1]} : vector<10x128xf32> to vector<1x32xf32>
    %21 = vector.extract_strided_slice %18 {offsets = [2, 0], sizes = [1, 32], strides = [1, 1]} : vector<10x128xf32> to vector<1x32xf32>
    %22 = vector.extract_strided_slice %18 {offsets = [3, 0], sizes = [1, 32], strides = [1, 1]} : vector<10x128xf32> to vector<1x32xf32>
    %23 = vector.extract_strided_slice %18 {offsets = [4, 0], sizes = [1, 32], strides = [1, 1]} : vector<10x128xf32> to vector<1x32xf32>
    %24 = vector.extract_strided_slice %18 {offsets = [5, 0], sizes = [1, 32], strides = [1, 1]} : vector<10x128xf32> to vector<1x32xf32>
    %25 = vector.extract_strided_slice %18 {offsets = [6, 0], sizes = [1, 32], strides = [1, 1]} : vector<10x128xf32> to vector<1x32xf32>
    %26 = vector.extract_strided_slice %18 {offsets = [7, 0], sizes = [1, 32], strides = [1, 1]} : vector<10x128xf32> to vector<1x32xf32>
    %27 = vector.extract_strided_slice %18 {offsets = [8, 0], sizes = [1, 32], strides = [1, 1]} : vector<10x128xf32> to vector<1x32xf32>
    %28 = vector.extract_strided_slice %18 {offsets = [9, 0], sizes = [1, 128], strides = [1, 1]} : vector<10x128xf32> to vector<1x128xf32>
    %c0_18 = arith.constant 0 : index
    %c0_19 = arith.constant 0 : index
    %29 = vector.load %arg9[%c0_18, %c0_19] : memref<100x32xf32, #tpu.memory_space<vmem>>, vector<100x32xf32>
    %30 = vector.extract_strided_slice %29 {offsets = [0, 0], sizes = [32, 32], strides = [1, 1]} : vector<100x32xf32> to vector<32x32xf32>
    %31 = vector.extract_strided_slice %29 {offsets = [32, 0], sizes = [32, 32], strides = [1, 1]} : vector<100x32xf32> to vector<32x32xf32>
    %32 = vector.extract_strided_slice %29 {offsets = [64, 0], sizes = [32, 4], strides = [1, 1]} : vector<100x32xf32> to vector<32x4xf32>
    %33 = vector.extract_strided_slice %29 {offsets = [96, 0], sizes = [4, 32], strides = [1, 1]} : vector<100x32xf32> to vector<4x32xf32>
    %c0_20 = arith.constant 0 : index
    %c0_21 = arith.constant 0 : index
    %34 = vector.load %arg10[%c0_20, %c0_21] : memref<100x32xf32, #tpu.memory_space<vmem>>, vector<100x32xf32>
    %35 = vector.extract_strided_slice %34 {offsets = [0, 0], sizes = [32, 32], strides = [1, 1]} : vector<100x32xf32> to vector<32x32xf32>
    %36 = vector.extract_strided_slice %34 {offsets = [32, 0], sizes = [32, 32], strides = [1, 1]} : vector<100x32xf32> to vector<32x32xf32>
    %37 = vector.extract_strided_slice %34 {offsets = [64, 0], sizes = [32, 4], strides = [1, 1]} : vector<100x32xf32> to vector<32x4xf32>
    %38 = vector.extract_strided_slice %34 {offsets = [96, 0], sizes = [4, 32], strides = [1, 1]} : vector<100x32xf32> to vector<4x32xf32>
    %cst = arith.constant dense<0.000000e+00> : vector<8x96xf32>
    %39 = tpu.matmul %1, %11, %cst {dimension_numbers = #tpu.dot_dimension_numbers<[1], [0], [0], [1], [0, 0, 1, 1], [], []>} : vector<8x32xf32>, vector<32x96xf32>, vector<8x96xf32> -> vector<8x96xf32>
    %40 = vector.extract_strided_slice %39 {offsets = [0, 0], sizes = [8, 32], strides = [1, 1]} : vector<8x96xf32> to vector<8x32xf32>
    %41 = vector.extract_strided_slice %39 {offsets = [0, 32], sizes = [8, 32], strides = [1, 1]} : vector<8x96xf32> to vector<8x32xf32>
    %42 = vector.extract_strided_slice %39 {offsets = [0, 64], sizes = [8, 32], strides = [1, 1]} : vector<8x96xf32> to vector<8x32xf32>
    %43 = tpu.transpose %41, [1, 0] : vector<8x32xf32> -> vector<32x8xf32>
    %44 = tpu.concatenate %43, %43, %43, %43 in 1 : vector<32x8xf32>, vector<32x8xf32>, vector<32x8xf32>, vector<32x8xf32> -> vector<32x32xf32>
    %45 = arith.mulf %44, %30 : vector<32x32xf32>
    %46 = tpu.concatenate %42, %42, %42, %42 in 0 : vector<8x32xf32>, vector<8x32xf32>, vector<8x32xf32>, vector<8x32xf32> -> vector<32x32xf32>
    %47 = arith.mulf %46, %31 : vector<32x32xf32>
    %cst_22 = arith.constant dense<0.000000e+00> : vector<8x32xf32>
    %48 = tpu.matmul %40, %45, %cst_22 {dimension_numbers = #tpu.dot_dimension_numbers<[1], [0], [0], [1], [0, 0, 1, 1], [], []>} : vector<8x32xf32>, vector<32x32xf32>, vector<8x32xf32> -> vector<8x32xf32>
    %49 = arith.addf %48, %7 : vector<8x32xf32>
    %cst_23 = arith.constant dense<0xFF800000> : vector<8xf32>
    %50 = vector.multi_reduction <maximumf>, %49, %cst_23 [1] : vector<8x32xf32> to vector<8xf32>
    %51 = vector.shape_cast %50 : vector<8xf32> to vector<8x1xf32>
    %52 = vector.broadcast %51 : vector<8x1xf32> to vector<8x32xf32>
    %53 = arith.subf %49, %52 : vector<8x32xf32>
    %54 = math.exp %53 : vector<8x32xf32>
    %cst_24 = arith.constant dense<0.000000e+00> : vector<8x4xf32>
    %55 = tpu.matmul %54, %32, %cst_24 {dimension_numbers = #tpu.dot_dimension_numbers<[1], [0], [0], [1], [0, 0, 1, 1], [], []>} : vector<8x32xf32>, vector<32x4xf32>, vector<8x4xf32> -> vector<8x4xf32>
    %cst_25 = arith.constant dense<0.000000e+00> : vector<8x32xf32>
    %56 = tpu.matmul %55, %33, %cst_25 {dimension_numbers = #tpu.dot_dimension_numbers<[1], [0], [0], [1], [0, 0, 1, 1], [], []>} : vector<8x4xf32>, vector<4x32xf32>, vector<8x32xf32> -> vector<8x32xf32>
    %57 = tpu.reciprocal %56 {approx = true} : vector<8x32xf32> -> vector<8x32xf32>
    %58 = arith.mulf %54, %57 : vector<8x32xf32>
    %cst_26 = arith.constant dense<0.000000e+00> : vector<8x32xf32>
    %59 = tpu.matmul %58, %47, %cst_26 {dimension_numbers = #tpu.dot_dimension_numbers<[1], [0], [0], [1], [0, 0, 1, 1], [], []>} : vector<8x32xf32>, vector<32x32xf32>, vector<8x32xf32> -> vector<8x32xf32>
    %cst_27 = arith.constant dense<0.000000e+00> : vector<8x32xf32>
    %60 = tpu.matmul %59, %12, %cst_27 {dimension_numbers = #tpu.dot_dimension_numbers<[1], [0], [0], [1], [0, 0, 1, 1], [], []>} : vector<8x32xf32>, vector<32x32xf32>, vector<8x32xf32> -> vector<8x32xf32>
    %61 = vector.broadcast %19 : vector<1x32xf32> to vector<8x32xf32>
    %62 = arith.addf %60, %61 : vector<8x32xf32>
    %63 = arith.addf %62, %1 : vector<8x32xf32>
    %cst_28 = arith.constant dense<0.000000e+00> : vector<8xf32>
    %64 = vector.multi_reduction <add>, %63, %cst_28 [1] : vector<8x32xf32> to vector<8xf32>
    %65 = vector.shape_cast %64 : vector<8xf32> to vector<8x1xf32>
    %cst_29 = arith.constant 3.200000e+01 : f32
    %66 = vector.broadcast %cst_29 : f32 to vector<8x1xf32>
    %67 = arith.divf %65, %66 : vector<8x1xf32>
    %68 = vector.broadcast %67 : vector<8x1xf32> to vector<8x32xf32>
    %69 = arith.subf %63, %68 : vector<8x32xf32>
    %70 = arith.mulf %69, %69 : vector<8x32xf32>
    %cst_30 = arith.constant dense<0.000000e+00> : vector<8xf32>
    %71 = vector.multi_reduction <add>, %70, %cst_30 [1] : vector<8x32xf32> to vector<8xf32>
    %72 = vector.shape_cast %71 : vector<8xf32> to vector<8x1xf32>
    %cst_31 = arith.constant 3.200000e+01 : f32
    %73 = vector.broadcast %cst_31 : f32 to vector<8x1xf32>
    %74 = arith.divf %72, %73 : vector<8x1xf32>
    %75 = vector.broadcast %67 : vector<8x1xf32> to vector<8x32xf32>
    %76 = arith.subf %63, %75 : vector<8x32xf32>
    %cst_32 = arith.constant 9.99999974E-6 : f32
    %77 = vector.broadcast %cst_32 : f32 to vector<8x1xf32>
    %78 = arith.addf %74, %77 : vector<8x1xf32>
    %79 = math.rsqrt %78 : vector<8x1xf32>
    %80 = vector.broadcast %79 : vector<8x1xf32> to vector<8x32xf32>
    %81 = arith.mulf %76, %80 : vector<8x32xf32>
    %82 = vector.broadcast %20 : vector<1x32xf32> to vector<8x32xf32>
    %83 = arith.mulf %81, %82 : vector<8x32xf32>
    %84 = vector.broadcast %21 : vector<1x32xf32> to vector<8x32xf32>
    %85 = arith.addf %83, %84 : vector<8x32xf32>
    %cst_33 = arith.constant dense<0.000000e+00> : vector<8x32xf32>
    %86 = tpu.matmul %85, %13, %cst_33 {dimension_numbers = #tpu.dot_dimension_numbers<[1], [0], [0], [1], [0, 0, 1, 1], [], []>} : vector<8x32xf32>, vector<32x32xf32>, vector<8x32xf32> -> vector<8x32xf32>
    %cst_34 = arith.constant dense<0.000000e+00> : vector<8x32xf32>
    %87 = tpu.matmul %5, %14, %cst_34 {dimension_numbers = #tpu.dot_dimension_numbers<[1], [0], [0], [1], [0, 0, 1, 1], [], []>} : vector<8x32xf32>, vector<32x32xf32>, vector<8x32xf32> -> vector<8x32xf32>
    %cst_35 = arith.constant dense<0.000000e+00> : vector<8x32xf32>
    %88 = tpu.matmul %3, %15, %cst_35 {dimension_numbers = #tpu.dot_dimension_numbers<[1], [0], [0], [1], [0, 0, 1, 1], [], []>} : vector<8x32xf32>, vector<32x32xf32>, vector<8x32xf32> -> vector<8x32xf32>
    %89 = tpu.transpose %87, [1, 0] : vector<8x32xf32> -> vector<32x8xf32>
    %90 = tpu.concatenate %89, %89, %89, %89 in 1 : vector<32x8xf32>, vector<32x8xf32>, vector<32x8xf32>, vector<32x8xf32> -> vector<32x32xf32>
    %91 = arith.mulf %90, %35 : vector<32x32xf32>
    %92 = tpu.concatenate %88, %88, %88, %88 in 0 : vector<8x32xf32>, vector<8x32xf32>, vector<8x32xf32>, vector<8x32xf32> -> vector<32x32xf32>
    %93 = arith.mulf %92, %36 : vector<32x32xf32>
    %cst_36 = arith.constant dense<0.000000e+00> : vector<8x32xf32>
    %94 = tpu.matmul %86, %91, %cst_36 {dimension_numbers = #tpu.dot_dimension_numbers<[1], [0], [0], [1], [0, 0, 1, 1], [], []>} : vector<8x32xf32>, vector<32x32xf32>, vector<8x32xf32> -> vector<8x32xf32>
    %95 = arith.addf %94, %9 : vector<8x32xf32>
    %cst_37 = arith.constant dense<0xFF800000> : vector<8xf32>
    %96 = vector.multi_reduction <maximumf>, %95, %cst_37 [1] : vector<8x32xf32> to vector<8xf32>
    %97 = vector.shape_cast %96 : vector<8xf32> to vector<8x1xf32>
    %98 = vector.broadcast %97 : vector<8x1xf32> to vector<8x32xf32>
    %99 = arith.subf %95, %98 : vector<8x32xf32>
    %100 = math.exp %99 : vector<8x32xf32>
    %cst_38 = arith.constant dense<0.000000e+00> : vector<8x4xf32>
    %101 = tpu.matmul %100, %37, %cst_38 {dimension_numbers = #tpu.dot_dimension_numbers<[1], [0], [0], [1], [0, 0, 1, 1], [], []>} : vector<8x32xf32>, vector<32x4xf32>, vector<8x4xf32> -> vector<8x4xf32>
    %cst_39 = arith.constant dense<0.000000e+00> : vector<8x32xf32>
    %102 = tpu.matmul %101, %38, %cst_39 {dimension_numbers = #tpu.dot_dimension_numbers<[1], [0], [0], [1], [0, 0, 1, 1], [], []>} : vector<8x4xf32>, vector<4x32xf32>, vector<8x32xf32> -> vector<8x32xf32>
    %103 = tpu.reciprocal %102 {approx = true} : vector<8x32xf32> -> vector<8x32xf32>
    %104 = arith.mulf %100, %103 : vector<8x32xf32>
    %cst_40 = arith.constant dense<0.000000e+00> : vector<8x32xf32>
    %105 = tpu.matmul %104, %93, %cst_40 {dimension_numbers = #tpu.dot_dimension_numbers<[1], [0], [0], [1], [0, 0, 1, 1], [], []>} : vector<8x32xf32>, vector<32x32xf32>, vector<8x32xf32> -> vector<8x32xf32>
    %cst_41 = arith.constant dense<0.000000e+00> : vector<8x32xf32>
    %106 = tpu.matmul %105, %16, %cst_41 {dimension_numbers = #tpu.dot_dimension_numbers<[1], [0], [0], [1], [0, 0, 1, 1], [], []>} : vector<8x32xf32>, vector<32x32xf32>, vector<8x32xf32> -> vector<8x32xf32>
    %107 = vector.broadcast %22 : vector<1x32xf32> to vector<8x32xf32>
    %108 = arith.addf %106, %107 : vector<8x32xf32>
    %109 = arith.addf %108, %85 : vector<8x32xf32>
    %cst_42 = arith.constant dense<0.000000e+00> : vector<8xf32>
    %110 = vector.multi_reduction <add>, %109, %cst_42 [1] : vector<8x32xf32> to vector<8xf32>
    %111 = vector.shape_cast %110 : vector<8xf32> to vector<8x1xf32>
    %cst_43 = arith.constant 3.200000e+01 : f32
    %112 = vector.broadcast %cst_43 : f32 to vector<8x1xf32>
    %113 = arith.divf %111, %112 : vector<8x1xf32>
    %114 = vector.broadcast %113 : vector<8x1xf32> to vector<8x32xf32>
    %115 = arith.subf %109, %114 : vector<8x32xf32>
    %116 = arith.mulf %115, %115 : vector<8x32xf32>
    %cst_44 = arith.constant dense<0.000000e+00> : vector<8xf32>
    %117 = vector.multi_reduction <add>, %116, %cst_44 [1] : vector<8x32xf32> to vector<8xf32>
    %118 = vector.shape_cast %117 : vector<8xf32> to vector<8x1xf32>
    %cst_45 = arith.constant 3.200000e+01 : f32
    %119 = vector.broadcast %cst_45 : f32 to vector<8x1xf32>
    %120 = arith.divf %118, %119 : vector<8x1xf32>
    %121 = vector.broadcast %113 : vector<8x1xf32> to vector<8x32xf32>
    %122 = arith.subf %109, %121 : vector<8x32xf32>
    %cst_46 = arith.constant 9.99999974E-6 : f32
    %123 = vector.broadcast %cst_46 : f32 to vector<8x1xf32>
    %124 = arith.addf %120, %123 : vector<8x1xf32>
    %125 = math.rsqrt %124 : vector<8x1xf32>
    %126 = vector.broadcast %125 : vector<8x1xf32> to vector<8x32xf32>
    %127 = arith.mulf %122, %126 : vector<8x32xf32>
    %128 = vector.broadcast %23 : vector<1x32xf32> to vector<8x32xf32>
    %129 = arith.mulf %127, %128 : vector<8x32xf32>
    %130 = vector.broadcast %24 : vector<1x32xf32> to vector<8x32xf32>
    %131 = arith.addf %129, %130 : vector<8x32xf32>
    %cst_47 = arith.constant dense<0.000000e+00> : vector<8x128xf32>
    %132 = tpu.matmul %131, %17, %cst_47 {dimension_numbers = #tpu.dot_dimension_numbers<[1], [0], [0], [1], [0, 0, 1, 1], [], []>} : vector<8x32xf32>, vector<32x128xf32>, vector<8x128xf32> -> vector<8x128xf32>
    %133 = vector.broadcast %28 : vector<1x128xf32> to vector<8x128xf32>
    %134 = arith.addf %132, %133 : vector<8x128xf32>
    %cst_48 = arith.constant 0.000000e+00 : f32
    %135 = vector.broadcast %cst_48 : f32 to vector<8x128xf32>
    %136 = arith.maximumf %134, %135 : vector<8x128xf32>
    %c0_49 = arith.constant 0 : index
    %c0_50 = arith.constant 0 : index
    %137 = vector.load %arg7[%c0_49, %c0_50] : memref<128x32xf32, #tpu.memory_space<vmem>>, vector<128x32xf32>
    %cst_51 = arith.constant dense<0.000000e+00> : vector<8x32xf32>
    %138 = tpu.matmul %136, %137, %cst_51 {dimension_numbers = #tpu.dot_dimension_numbers<[1], [0], [0], [1], [0, 0, 1, 1], [], []>} : vector<8x128xf32>, vector<128x32xf32>, vector<8x32xf32> -> vector<8x32xf32>
    %139 = vector.broadcast %27 : vector<1x32xf32> to vector<8x32xf32>
    %140 = arith.addf %138, %139 : vector<8x32xf32>
    %141 = arith.addf %140, %131 : vector<8x32xf32>
    %cst_52 = arith.constant dense<0.000000e+00> : vector<8xf32>
    %142 = vector.multi_reduction <add>, %141, %cst_52 [1] : vector<8x32xf32> to vector<8xf32>
    %143 = vector.shape_cast %142 : vector<8xf32> to vector<8x1xf32>
    %cst_53 = arith.constant 3.200000e+01 : f32
    %144 = vector.broadcast %cst_53 : f32 to vector<8x1xf32>
    %145 = arith.divf %143, %144 : vector<8x1xf32>
    %146 = vector.broadcast %145 : vector<8x1xf32> to vector<8x32xf32>
    %147 = arith.subf %141, %146 : vector<8x32xf32>
    %148 = arith.mulf %147, %147 : vector<8x32xf32>
    %cst_54 = arith.constant dense<0.000000e+00> : vector<8xf32>
    %149 = vector.multi_reduction <add>, %148, %cst_54 [1] : vector<8x32xf32> to vector<8xf32>
    %150 = vector.shape_cast %149 : vector<8xf32> to vector<8x1xf32>
    %cst_55 = arith.constant 3.200000e+01 : f32
    %151 = vector.broadcast %cst_55 : f32 to vector<8x1xf32>
    %152 = arith.divf %150, %151 : vector<8x1xf32>
    %153 = vector.broadcast %145 : vector<8x1xf32> to vector<8x32xf32>
    %154 = arith.subf %141, %153 : vector<8x32xf32>
    %cst_56 = arith.constant 9.99999974E-6 : f32
    %155 = vector.broadcast %cst_56 : f32 to vector<8x1xf32>
    %156 = arith.addf %152, %155 : vector<8x1xf32>
    %157 = math.rsqrt %156 : vector<8x1xf32>
    %158 = vector.broadcast %157 : vector<8x1xf32> to vector<8x32xf32>
    %159 = arith.mulf %154, %158 : vector<8x32xf32>
    %160 = vector.broadcast %25 : vector<1x32xf32> to vector<8x32xf32>
    %161 = arith.mulf %159, %160 : vector<8x32xf32>
    %162 = vector.broadcast %26 : vector<1x32xf32> to vector<8x32xf32>
    %163 = arith.addf %161, %162 : vector<8x32xf32>
    %c0_57 = arith.constant 0 : index
    %c0_58 = arith.constant 0 : index
    %c0_59 = arith.constant 0 : index
    %164 = vector.load %arg11[%c0_57, %c0_58, %c0_59] : memref<1x8x32xf32, #tpu.memory_space<vmem>>, vector<1x8x32xf32>
    %165 = vector.shape_cast %164 : vector<1x8x32xf32> to vector<8x32xf32>
    %166 = vector.shape_cast %163 : vector<8x32xf32> to vector<1x8x32xf32>
    tpu.vector_store %arg11[%c0_57, %c0_58, %c0_59], %166 {strides = array<i32>} : memref<1x8x32xf32, #tpu.memory_space<vmem>>, vector<1x8x32xf32>,
    return
  }
  func.func @transform_0(%arg0: i32) -> (i32, i32, i32) {
    %c0_i32 = arith.constant 0 : i32
    %c0_i32_0 = arith.constant 0 : i32
    %c0_i32_1 = arith.constant 0 : i32
    return %arg0, %c0_i32, %c0_i32_0 : i32, i32, i32
  }
  func.func @transform_1(%arg0: i32) -> (i32, i32, i32) {
    %c0_i32 = arith.constant 0 : i32
    %c0_i32_0 = arith.constant 0 : i32
    %c0_i32_1 = arith.constant 0 : i32
    return %arg0, %c0_i32, %c0_i32_0 : i32, i32, i32
  }
  func.func @transform_2(%arg0: i32) -> (i32, i32, i32) {
    %c0_i32 = arith.constant 0 : i32
    %c0_i32_0 = arith.constant 0 : i32
    %c0_i32_1 = arith.constant 0 : i32
    return %arg0, %c0_i32, %c0_i32_0 : i32, i32, i32
  }
  func.func @transform_3(%arg0: i32) -> (i32, i32, i32) {
    %c0_i32 = arith.constant 0 : i32
    %c0_i32_0 = arith.constant 0 : i32
    %c0_i32_1 = arith.constant 0 : i32
    return %arg0, %c0_i32, %c0_i32_0 : i32, i32, i32
  }
  func.func @transform_4(%arg0: i32) -> (i32, i32, i32) {
    %c0_i32 = arith.constant 0 : i32
    %c0_i32_0 = arith.constant 0 : i32
    %c0_i32_1 = arith.constant 0 : i32
    return %arg0, %c0_i32, %c0_i32_0 : i32, i32, i32
  }
  func.func @transform_5(%arg0: i32) -> (i32, i32) {
    %c0_i32 = arith.constant 0 : i32
    %c0_i32_0 = arith.constant 0 : i32
    %c0_i32_1 = arith.constant 0 : i32
    return %c0_i32, %c0_i32_0 : i32, i32
  }
  func.func @transform_6(%arg0: i32) -> (i32, i32) {
    %c0_i32 = arith.constant 0 : i32
    %c0_i32_0 = arith.constant 0 : i32
    %c0_i32_1 = arith.constant 0 : i32
    return %c0_i32, %c0_i32_0 : i32, i32
  }
  func.func @transform_7(%arg0: i32) -> (i32, i32) {
    %c0_i32 = arith.constant 0 : i32
    %c0_i32_0 = arith.constant 0 : i32
    %c0_i32_1 = arith.constant 0 : i32
    return %c0_i32, %c0_i32_0 : i32, i32
  }
  func.func @transform_8(%arg0: i32) -> (i32, i32) {
    %c0_i32 = arith.constant 0 : i32
    %c0_i32_0 = arith.constant 0 : i32
    %c0_i32_1 = arith.constant 0 : i32
    return %c0_i32, %c0_i32_0 : i32, i32
  }
  func.func @transform_9(%arg0: i32) -> (i32, i32) {
    %c0_i32 = arith.constant 0 : i32
    %c0_i32_0 = arith.constant 0 : i32
    %c0_i32_1 = arith.constant 0 : i32
    return %c0_i32, %c0_i32_0 : i32, i32
  }
  func.func @transform_10(%arg0: i32) -> (i32, i32, i32) {
    %c0_i32 = arith.constant 0 : i32
    %c0_i32_0 = arith.constant 0 : i32
    %c0_i32_1 = arith.constant 0 : i32
    return %arg0, %c0_i32, %c0_i32_0 : i32, i32, i32
  }
}

</mosaic_0001>

<llo_original>
// kernel: tpu_custom_call.1
$region0: #{tpu_custom_call.1}
  #allocation0 [shape = 'u32[]', space=smem, size = 0x4, offset = 0x4, fixed_abs, tag = 'smem constant byte address 0x4 - core index']
  #allocation1 [shape = 'u32[144,128]{1,0:T(1,128)}', space=vmem, size = 0x12000, scoped, tag = 'internal scratch']
  %s0 = inlined_call_operand.vmem [shape: f32[2,8,32], index: 0, kind: input, shape index: {}]
  %s1 = inlined_call_operand.vmem [shape: f32[2,8,32], index: 1, kind: input, shape index: {}]
  %s2 = inlined_call_operand.vmem [shape: f32[2,8,32], index: 2, kind: input, shape index: {}]
  %s3 = inlined_call_operand.vmem [shape: f32[2,8,32], index: 3, kind: input, shape index: {}]
  %s4 = inlined_call_operand.vmem [shape: f32[2,8,32], index: 4, kind: input, shape index: {}]
  %s5 = inlined_call_operand.vmem [shape: f32[32,384], index: 5, kind: input, shape index: {}]
  %s6 = inlined_call_operand.vmem [shape: f32[128,32], index: 6, kind: input, shape index: {}]
  %s7 = inlined_call_operand.vmem [shape: f32[10,128], index: 7, kind: input, shape index: {}]
  %s8 = inlined_call_operand.vmem [shape: f32[100,32], index: 8, kind: input, shape index: {}]
  %s9 = inlined_call_operand.vmem [shape: f32[100,32], index: 9, kind: input, shape index: {}]
  %s10 = inlined_call_operand.hbm [shape: f32[2,8,32], index: 10, kind: output, shape index: {}]
  %s11 = sld [smem:[#allocation0]]
  $region73: #{tpu_custom_call.1} parent=0
    _
  %s13 = ssub.s32 1, %s11
  %s14 = scalar_select 0, %s13, %s11
  $region1: #{tpu_custom_call.1} parent=0
    #allocation2 [shape = 'u8[8192]{0}', space=vmem, size = 0x2000, scoped, tag = 'output window, operand 0']
    #allocation3 [shape = 's32[2]{0}', space=sflag, size = 0x8, scoped, tag = 'scoped memory for tpu_custom_call.1']
    %15 = vsyncpa [#allocation3], 0
    %s16 = scalar_lea.sflag [#allocation3], 1
    %17 = vsyncpa %s16, 0
    loop: start=0, step=1, limit=4
    $region2: #{tpu_custom_call.1} parent=1 // loop_pre_header
      _
    $region3: #{tpu_custom_call.1} parent=1 // loop_header
      %s19 = sphi 0, %s23
      %p20 = scmp.ge.s32.totalorder %s19, 4
      %s29 = sphi 0, %s31
      %s32 = sphi 0, %s29
      %s33 = sphi 0, %s32
      %s49 = sphi 0, %s33
      %s55 = sphi 0, %s57
      %s58 = sphi 0, %s55
      %s59 = sphi 0, %s58
      %s75 = sphi 0, %s59
      %s81 = sphi 0, %s83
      %s84 = sphi 0, %s81
      %s85 = sphi 0, %s84
      %s101 = sphi 0, %s85
      %s107 = sphi 0, %s109
      %s110 = sphi 0, %s107
      %s111 = sphi 0, %s110
      %s127 = sphi 0, %s111
      %s133 = sphi 0, %s135
      %s136 = sphi 0, %s133
      %s137 = sphi 0, %s136
      %s153 = sphi 0, %s137
      %s157 = sphi 0, %s157
      %s159 = sphi 0, %s157
      %s160 = sphi 0, %s159
      %s174 = sphi 0, %s160
      %s178 = sphi 0, %s178
      %s180 = sphi 0, %s178
      %s181 = sphi 0, %s180
      %s195 = sphi 0, %s181
      %s199 = sphi 0, %s199
      %s201 = sphi 0, %s199
      %s202 = sphi 0, %s201
      %s216 = sphi 0, %s202
      %s220 = sphi 0, %s220
      %s222 = sphi 0, %s220
      %s223 = sphi 0, %s222
      %s237 = sphi 0, %s223
      %s241 = sphi 0, %s241
      %s243 = sphi 0, %s241
      %s244 = sphi 0, %s243
      %s258 = sphi 0, %s244
      %s264 = sphi 0, %s266
      %s267 = sphi 0, %s264
      %s268 = sphi 0, %s267
      %s284 = sphi 0, %s268
    $region4: #{tpu_custom_call.1} parent=1 // loop_header_branch
      %22 = sbr.rel (%p20) target = $region8
    $region5: #{tpu_custom_call.1} parent=1 // loop_body
      %s24 = ssub.s32 %s19, 1
      %s25 = ssub.s32 %s19, 2
      %s26 = sadd.s32 %s19, 1
      %s27 = ssub.s32 %s19, %s26
      %p28 = scmp.eq.s32.totalorder %s27, 0
      %s30 = sadd.s32 %s29, 1
      %s31 = scalar_select %p28, %s29, %s30
      %p34 = pneg %p28
      %p35 = scmp.eq.s32.totalorder %s19, 1
      %p36 = por %p34, %p35
      %p37 = scmp.ne.s32.totalorder %s29, %s32
      %p38 = scmp.eq.s32.totalorder %s19, 0
      %p39 = por %p37, %p38
      %p40 = scmp.ne.s32.totalorder %s29, %s32
      %p41 = scmp.eq.s32.totalorder %s24, 1
      %p42 = por %p40, %p41
      %p43 = scmp.ne.s32.totalorder %s32, %s33
      %p44 = scmp.eq.s32.totalorder %s24, 0
      %p45 = por %p43, %p44
      %p46 = scmp.ne.s32.totalorder %s32, %s33
      %p47 = scmp.eq.s32.totalorder %s25, 1
      %p48 = por %p46, %p47
      %p50 = scmp.ne.s32.totalorder %s33, %s49
      %p51 = scmp.eq.s32.totalorder %s25, 0
      %p52 = por %p50, %p51
      %s53 = ssub.s32 %s19, %s26
      %p54 = scmp.eq.s32.totalorder %s53, 0
      %s56 = sadd.s32 %s55, 1
      %s57 = scalar_select %p54, %s55, %s56
      %p60 = pneg %p54
      %p61 = scmp.eq.s32.totalorder %s19, 1
      %p62 = por %p60, %p61
      %p63 = scmp.ne.s32.totalorder %s55, %s58
      %p64 = scmp.eq.s32.totalorder %s19, 0
      %p65 = por %p63, %p64
      %p66 = scmp.ne.s32.totalorder %s55, %s58
      %p67 = scmp.eq.s32.totalorder %s24, 1
      %p68 = por %p66, %p67
      %p69 = scmp.ne.s32.totalorder %s58, %s59
      %p70 = scmp.eq.s32.totalorder %s24, 0
      %p71 = por %p69, %p70
      %p72 = scmp.ne.s32.totalorder %s58, %s59
      %p73 = scmp.eq.s32.totalorder %s25, 1
      %p74 = por %p72, %p73
      %p76 = scmp.ne.s32.totalorder %s59, %s75
      %p77 = scmp.eq.s32.totalorder %s25, 0
      %p78 = por %p76, %p77
      %s79 = ssub.s32 %s19, %s26
      %p80 = scmp.eq.s32.totalorder %s79, 0
      %s82 = sadd.s32 %s81, 1
      %s83 = scalar_select %p80, %s81, %s82
      %p86 = pneg %p80
      %p87 = scmp.eq.s32.totalorder %s19, 1
      %p88 = por %p86, %p87
      %p89 = scmp.ne.s32.totalorder %s81, %s84
      %p90 = scmp.eq.s32.totalorder %s19, 0
      %p91 = por %p89, %p90
      %p92 = scmp.ne.s32.totalorder %s81, %s84
      %p93 = scmp.eq.s32.totalorder %s24, 1
      %p94 = por %p92, %p93
      %p95 = scmp.ne.s32.totalorder %s84, %s85
      %p96 = scmp.eq.s32.totalorder %s24, 0
      %p97 = por %p95, %p96
      %p98 = scmp.ne.s32.totalorder %s84, %s85
      %p99 = scmp.eq.s32.totalorder %s25, 1
      %p100 = por %p98, %p99
      %p102 = scmp.ne.s32.totalorder %s85, %s101
      %p103 = scmp.eq.s32.totalorder %s25, 0
      %p104 = por %p102, %p103
      %s105 = ssub.s32 %s19, %s26
      %p106 = scmp.eq.s32.totalorder %s105, 0
      %s108 = sadd.s32 %s107, 1
      %s109 = scalar_select %p106, %s107, %s108
      %p112 = pneg %p106
      %p113 = scmp.eq.s32.totalorder %s19, 1
      %p114 = por %p112, %p113
      %p115 = scmp.ne.s32.totalorder %s107, %s110
      %p116 = scmp.eq.s32.totalorder %s19, 0
      %p117 = por %p115, %p116
      %p118 = scmp.ne.s32.totalorder %s107, %s110
      %p119 = scmp.eq.s32.totalorder %s24, 1
      %p120 = por %p118, %p119
      %p121 = scmp.ne.s32.totalorder %s110, %s111
      %p122 = scmp.eq.s32.totalorder %s24, 0
      %p123 = por %p121, %p122
      %p124 = scmp.ne.s32.totalorder %s110, %s111
      %p125 = scmp.eq.s32.totalorder %s25, 1
      %p126 = por %p124, %p125
      %p128 = scmp.ne.s32.totalorder %s111, %s127
      %p129 = scmp.eq.s32.totalorder %s25, 0
      %p130 = por %p128, %p129
      %s131 = ssub.s32 %s19, %s26
      %p132 = scmp.eq.s32.totalorder %s131, 0
      %s134 = sadd.s32 %s133, 1
      %s135 = scalar_select %p132, %s133, %s134
      %p138 = pneg %p132
      %p139 = scmp.eq.s32.totalorder %s19, 1
      %p140 = por %p138, %p139
      %p141 = scmp.ne.s32.totalorder %s133, %s136
      %p142 = scmp.eq.s32.totalorder %s19, 0
      %p143 = por %p141, %p142
      %p144 = scmp.ne.s32.totalorder %s133, %s136
      %p145 = scmp.eq.s32.totalorder %s24, 1
      %p146 = por %p144, %p145
      %p147 = scmp.ne.s32.totalorder %s136, %s137
      %p148 = scmp.eq.s32.totalorder %s24, 0
      %p149 = por %p147, %p148
      %p150 = scmp.ne.s32.totalorder %s136, %s137
      %p151 = scmp.eq.s32.totalorder %s25, 1
      %p152 = por %p150, %p151
      %p154 = scmp.ne.s32.totalorder %s137, %s153
      %p155 = scmp.eq.s32.totalorder %s25, 0
      %p156 = por %p154, %p155
      %s158 = sadd.s32 %s157, 1
      %p161 = scmp.eq.s32.totalorder %s19, 1
      %p162 = scmp.ne.s32.totalorder %s157, %s159
      %p163 = scmp.eq.s32.totalorder %s19, 0
      %p164 = por %p162, %p163
      %p165 = scmp.ne.s32.totalorder %s157, %s159
      %p166 = scmp.eq.s32.totalorder %s24, 1
      %p167 = por %p165, %p166
      %p168 = scmp.ne.s32.totalorder %s159, %s160
      %p169 = scmp.eq.s32.totalorder %s24, 0
      %p170 = por %p168, %p169
      %p171 = scmp.ne.s32.totalorder %s159, %s160
      %p172 = scmp.eq.s32.totalorder %s25, 1
      %p173 = por %p171, %p172
      %p175 = scmp.ne.s32.totalorder %s160, %s174
      %p176 = scmp.eq.s32.totalorder %s25, 0
      %p177 = por %p175, %p176
      %s179 = sadd.s32 %s178, 1
      %p182 = scmp.eq.s32.totalorder %s19, 1
      %p183 = scmp.ne.s32.totalorder %s178, %s180
      %p184 = scmp.eq.s32.totalorder %s19, 0
      %p185 = por %p183, %p184
      %p186 = scmp.ne.s32.totalorder %s178, %s180
      %p187 = scmp.eq.s32.totalorder %s24, 1
      %p188 = por %p186, %p187
      %p189 = scmp.ne.s32.totalorder %s180, %s181
      %p190 = scmp.eq.s32.totalorder %s24, 0
      %p191 = por %p189, %p190
      %p192 = scmp.ne.s32.totalorder %s180, %s181
      %p193 = scmp.eq.s32.totalorder %s25, 1
      %p194 = por %p192, %p193
      %p196 = scmp.ne.s32.totalorder %s181, %s195
      %p197 = scmp.eq.s32.totalorder %s25, 0
      %p198 = por %p196, %p197
      %s200 = sadd.s32 %s199, 1
      %p203 = scmp.eq.s32.totalorder %s19, 1
      %p204 = scmp.ne.s32.totalorder %s199, %s201
      %p205 = scmp.eq.s32.totalorder %s19, 0
      %p206 = por %p204, %p205
      %p207 = scmp.ne.s32.totalorder %s199, %s201
      %p208 = scmp.eq.s32.totalorder %s24, 1
      %p209 = por %p207, %p208
      %p210 = scmp.ne.s32.totalorder %s201, %s202
      %p211 = scmp.eq.s32.totalorder %s24, 0
      %p212 = por %p210, %p211
      %p213 = scmp.ne.s32.totalorder %s201, %s202
      %p214 = scmp.eq.s32.totalorder %s25, 1
      %p215 = por %p213, %p214
      %p217 = scmp.ne.s32.totalorder %s202, %s216
      %p218 = scmp.eq.s32.totalorder %s25, 0
      %p219 = por %p217, %p218
      %s221 = sadd.s32 %s220, 1
      %p224 = scmp.eq.s32.totalorder %s19, 1
      %p225 = scmp.ne.s32.totalorder %s220, %s222
      %p226 = scmp.eq.s32.totalorder %s19, 0
      %p227 = por %p225, %p226
      %p228 = scmp.ne.s32.totalorder %s220, %s222
      %p229 = scmp.eq.s32.totalorder %s24, 1
      %p230 = por %p228, %p229
      %p231 = scmp.ne.s32.totalorder %s222, %s223
      %p232 = scmp.eq.s32.totalorder %s24, 0
      %p233 = por %p231, %p232
      %p234 = scmp.ne.s32.totalorder %s222, %s223
      %p235 = scmp.eq.s32.totalorder %s25, 1
      %p236 = por %p234, %p235
      %p238 = scmp.ne.s32.totalorder %s223, %s237
      %p239 = scmp.eq.s32.totalorder %s25, 0
      %p240 = por %p238, %p239
      %s242 = sadd.s32 %s241, 1
      %p245 = scmp.eq.s32.totalorder %s19, 1
      %p246 = scmp.ne.s32.totalorder %s241, %s243
      %p247 = scmp.eq.s32.totalorder %s19, 0
      %p248 = por %p246, %p247
      %p249 = scmp.ne.s32.totalorder %s241, %s243
      %p250 = scmp.eq.s32.totalorder %s24, 1
      %p251 = por %p249, %p250
      %p252 = scmp.ne.s32.totalorder %s243, %s244
      %p253 = scmp.eq.s32.totalorder %s24, 0
      %p254 = por %p252, %p253
      %p255 = scmp.ne.s32.totalorder %s243, %s244
      %p256 = scmp.eq.s32.totalorder %s25, 1
      %p257 = por %p255, %p256
      %p259 = scmp.ne.s32.totalorder %s244, %s258
      %p260 = scmp.eq.s32.totalorder %s25, 0
      %p261 = por %p259, %p260
      %s262 = ssub.s32 %s19, %s26
      %p263 = scmp.eq.s32.totalorder %s262, 0
      %s265 = sadd.s32 %s264, 1
      %s266 = scalar_select %p263, %s264, %s265
      %p269 = pneg %p263
      %p270 = scmp.eq.s32.totalorder %s19, 1
      %p271 = por %p269, %p270
      %p272 = scmp.ne.s32.totalorder %s264, %s267
      %p273 = scmp.eq.s32.totalorder %s19, 0
      %p274 = por %p272, %p273
      %p275 = scmp.ne.s32.totalorder %s264, %s267
      %p276 = scmp.eq.s32.totalorder %s24, 1
      %p277 = por %p275, %p276
      %p278 = scmp.ne.s32.totalorder %s267, %s268
      %p279 = scmp.eq.s32.totalorder %s24, 0
      %p280 = por %p278, %p279
      %p281 = scmp.ne.s32.totalorder %s267, %s268
      %p282 = scmp.eq.s32.totalorder %s25, 1
      %p283 = por %p281, %p282
      %p285 = scmp.ne.s32.totalorder %s268, %s284
      %p286 = scmp.eq.s32.totalorder %s25, 0
      %p287 = por %p285, %p286
      %p288 = scmp.le.s32.totalorder 1, %s19
      %p289 = scmp.lt.s32.totalorder %s19, 3
      %p290 = pnand %p288, %p289
      %p291 = pneg %p290
      // Predicated region
      $region9: #{tpu_custom_call.1} parent=5 // pred_check
        _
      $region10: #{tpu_custom_call.1} parent=5 // pred_check_branch
        %293 = sbr.rel (%p290) target = $region12
      $region11: #{tpu_custom_call.1} parent=5 // pred_region
        %s294 = ssub.s32 %s19, 1
        // Predicated region
        $region13: #{tpu_custom_call.1} parent=11 // pred_check
          %p295 = pneg %p170
        $region14: #{tpu_custom_call.1} parent=11 // pred_check_branch
          %297 = sbr.rel (%p295) target = $region16
        $region15: #{tpu_custom_call.1} parent=11 // pred_region
          _
        $region16: #{tpu_custom_call.1} parent=11 // pred_fallthru
          _
        // Predicated region
        $region17: #{tpu_custom_call.1} parent=11 // pred_check
          %p298 = pneg %p191
        $region18: #{tpu_custom_call.1} parent=11 // pred_check_branch
          %300 = sbr.rel (%p298) target = $region20
        $region19: #{tpu_custom_call.1} parent=11 // pred_region
          _
        $region20: #{tpu_custom_call.1} parent=11 // pred_fallthru
          _
        // Predicated region
        $region21: #{tpu_custom_call.1} parent=11 // pred_check
          %p301 = pneg %p212
        $region22: #{tpu_custom_call.1} parent=11 // pred_check_branch
          %303 = sbr.rel (%p301) target = $region24
        $region23: #{tpu_custom_call.1} parent=11 // pred_region
          _
        $region24: #{tpu_custom_call.1} parent=11 // pred_fallthru
          _
        // Predicated region
        $region25: #{tpu_custom_call.1} parent=11 // pred_check
          %p304 = pneg %p233
        $region26: #{tpu_custom_call.1} parent=11 // pred_check_branch
          %306 = sbr.rel (%p304) target = $region28
        $region27: #{tpu_custom_call.1} parent=11 // pred_region
          _
        $region28: #{tpu_custom_call.1} parent=11 // pred_fallthru
          _
        // Predicated region
        $region29: #{tpu_custom_call.1} parent=11 // pred_check
          %p307 = pneg %p254
        $region30: #{tpu_custom_call.1} parent=11 // pred_check_branch
          %309 = sbr.rel (%p307) target = $region32
        $region31: #{tpu_custom_call.1} parent=11 // pred_region
          _
        $region32: #{tpu_custom_call.1} parent=11 // pred_fallthru
          _
      $region12: #{tpu_custom_call.1} parent=5 // pred_fallthru
        _
      %p310 = scmp.lt.s32.totalorder %s19, 2
      // Predicated region
      $region33: #{tpu_custom_call.1} parent=5 // pred_check
        %p311 = pneg %p310
      $region34: #{tpu_custom_call.1} parent=5 // pred_check_branch
        %313 = sbr.rel (%p311) target = $region36
      $region35: #{tpu_custom_call.1} parent=5 // pred_region
        // Predicated region
        $region37: #{tpu_custom_call.1} parent=35 // pred_check
          %p314 = pneg %p39
        $region38: #{tpu_custom_call.1} parent=35 // pred_check_branch
          %316 = sbr.rel (%p314) target = $region40
        $region39: #{tpu_custom_call.1} parent=35 // pred_region
          %p317 = scmp.lt.s32.totalorder %s19, 1
          %s318 = scalar_select %p317, %s19, 1
          %s319 = smul.addr %s318, 8
          %s320 = scalar_lea.vmem %s0, %s319
        $region40: #{tpu_custom_call.1} parent=35 // pred_fallthru
          _
        // Predicated region
        $region41: #{tpu_custom_call.1} parent=35 // pred_check
          %p321 = pneg %p65
        $region42: #{tpu_custom_call.1} parent=35 // pred_check_branch
          %323 = sbr.rel (%p321) target = $region44
        $region43: #{tpu_custom_call.1} parent=35 // pred_region
          %p324 = scmp.lt.s32.totalorder %s19, 1
          %s325 = scalar_select %p324, %s19, 1
          %s326 = smul.addr %s325, 8
          %s327 = scalar_lea.vmem %s1, %s326
        $region44: #{tpu_custom_call.1} parent=35 // pred_fallthru
          _
        // Predicated region
        $region45: #{tpu_custom_call.1} parent=35 // pred_check
          %p328 = pneg %p91
        $region46: #{tpu_custom_call.1} parent=35 // pred_check_branch
          %330 = sbr.rel (%p328) target = $region48
        $region47: #{tpu_custom_call.1} parent=35 // pred_region
          %p331 = scmp.lt.s32.totalorder %s19, 1
          %s332 = scalar_select %p331, %s19, 1
          %s333 = smul.addr %s332, 8
          %s334 = scalar_lea.vmem %s2, %s333
        $region48: #{tpu_custom_call.1} parent=35 // pred_fallthru
          _
        // Predicated region
        $region49: #{tpu_custom_call.1} parent=35 // pred_check
          %p335 = pneg %p117
        $region50: #{tpu_custom_call.1} parent=35 // pred_check_branch
          %337 = sbr.rel (%p335) target = $region52
        $region51: #{tpu_custom_call.1} parent=35 // pred_region
          %p338 = scmp.lt.s32.totalorder %s19, 1
          %s339 = scalar_select %p338, %s19, 1
          %s340 = smul.addr %s339, 8
          %s341 = scalar_lea.vmem %s3, %s340
        $region52: #{tpu_custom_call.1} parent=35 // pred_fallthru
          _
        // Predicated region
        $region53: #{tpu_custom_call.1} parent=35 // pred_check
          %p342 = pneg %p143
        $region54: #{tpu_custom_call.1} parent=35 // pred_check_branch
          %344 = sbr.rel (%p342) target = $region56
        $region55: #{tpu_custom_call.1} parent=35 // pred_region
          %p345 = scmp.lt.s32.totalorder %s19, 1
          %s346 = scalar_select %p345, %s19, 1
          %s347 = smul.addr %s346, 8
          %s348 = scalar_lea.vmem %s4, %s347
        $region56: #{tpu_custom_call.1} parent=35 // pred_fallthru
          _
      $region36: #{tpu_custom_call.1} parent=5 // pred_fallthru
        _
      %p349 = scmp.le.s32.totalorder 1, %s19
      %p350 = scmp.lt.s32.totalorder %s19, 3
      %p351 = pnand %p349, %p350
      %p352 = pneg %p351
      // Predicated region
      $region57: #{tpu_custom_call.1} parent=5 // pred_check
        _
      $region58: #{tpu_custom_call.1} parent=5 // pred_check_branch
        %354 = sbr.rel (%p351) target = $region60
      $region59: #{tpu_custom_call.1} parent=5 // pred_region
        %s355 = ssub.s32 %s19, 1
        %p356 = scmp.lt.s32.totalorder %s24, 1
        %s357 = scalar_select %p356, %s24, 1
        %s358 = smul.addr %s357, 8
        %s359 = scalar_lea.vmem %s0, %s358
        %p360 = pneg %p45
        %p361 = pneg %p42
        %p362 = scmp.lt.s32.totalorder %s24, 1
        %s363 = scalar_select %p362, %s24, 1
        %s364 = smul.addr %s363, 8
        %s365 = scalar_lea.vmem %s1, %s364
        %p366 = pneg %p71
        %p367 = pneg %p68
        %p368 = scmp.lt.s32.totalorder %s24, 1
        %s369 = scalar_select %p368, %s24, 1
        %s370 = smul.addr %s369, 8
        %s371 = scalar_lea.vmem %s2, %s370
        %p372 = pneg %p97
        %p373 = pneg %p94
        %p374 = scmp.lt.s32.totalorder %s24, 1
        %s375 = scalar_select %p374, %s24, 1
        %s376 = smul.addr %s375, 8
        %s377 = scalar_lea.vmem %s3, %s376
        %p378 = pneg %p123
        %p379 = pneg %p120
        %p380 = scmp.lt.s32.totalorder %s24, 1
        %s381 = scalar_select %p380, %s24, 1
        %s382 = smul.addr %s381, 8
        %s383 = scalar_lea.vmem %s4, %s382
        %p384 = pneg %p149
        %p385 = pneg %p146
        %p386 = pneg %p170
        %p387 = pneg %p167
        %p388 = pneg %p191
        %p389 = pneg %p188
        %p390 = pneg %p212
        %p391 = pneg %p209
        %p392 = pneg %p233
        %p393 = pneg %p230
        %p394 = pneg %p254
        %p395 = pneg %p251
        %p396 = pneg %p280
        %p397 = pneg %p277
        %s398 = sand.u32 %s267, 1
        %s399 = scalar_lea.sflag [#allocation3], %s398
        %s400 = sand.u32 %s267, 1
        %s401 = smul.addr %s400, 8
        %s402 = scalar_lea.vmem [#allocation2], %s401
        %p403 = scmp.lt.s32.totalorder %s24, 1
        %s404 = scalar_select %p403, %s24, 1
        %s405 = smul.addr %s404, 8
        %s406 = scalar_lea.vmem %s0, %s405
        %p407 = scmp.lt.s32.totalorder %s24, 1
        %s408 = scalar_select %p407, %s24, 1
        %s409 = smul.addr %s408, 8
        %s410 = scalar_lea.vmem %s1, %s409
        %p411 = scmp.lt.s32.totalorder %s24, 1
        %s412 = scalar_select %p411, %s24, 1
        %s413 = smul.addr %s412, 8
        %s414 = scalar_lea.vmem %s2, %s413
        %p415 = scmp.lt.s32.totalorder %s24, 1
        %s416 = scalar_select %p415, %s24, 1
        %s417 = smul.addr %s416, 8
        %s418 = scalar_lea.vmem %s3, %s417
        %p419 = scmp.lt.s32.totalorder %s24, 1
        %s420 = scalar_select %p419, %s24, 1
        %s421 = smul.addr %s420, 8
        %s422 = scalar_lea.vmem %s4, %s421
        %v423 = vld [vmem:[%s406] sm:$0xff]
        %v424 = vld [vmem:[%s410] sm:$0xff]
        %v425 = vld [vmem:[%s414] sm:$0xff]
        %v426 = vld [vmem:[%s418] sm:$0xff]
        %v427 = vld [vmem:[%s422] sm:$0xff]
        %v428 = vld [vmem:[%s5] sm:$0xff]
        %v429 = vld [vmem:[%s5 + $0x8] sm:$0xff]
        %v430 = vld [vmem:[%s5 + $0x10] sm:$0xff]
        %v431 = vld [vmem:[%s5 + $0x18] sm:$0xff]
        %v432 = vld [vmem:[%s5 + $0x20] sm:$0xff]
        %v433 = vld [vmem:[%s5 + $0x28] sm:$0xff]
        %v434 = vld [vmem:[%s5 + $0x30] sm:$0xff]
        %v435 = vld [vmem:[%s5 + $0x38] sm:$0xff]
        %v436 = vld [vmem:[%s5 + $0x40] sm:$0xff]
        %v437 = vld [vmem:[%s5 + $0x48] sm:$0xff]
        %v438 = vld [vmem:[%s5 + $0x50] sm:$0xff]
        %v439 = vld [vmem:[%s5 + $0x58] sm:$0xff]
        %v440 = vld [vmem:[%s7] sm:$0xff]
        %v441 = vld [vmem:[%s7 + $0x8] sm:$0x3]
        %v442 = vld [vmem:[%s8] sm:$0xff]
        %v443 = vld [vmem:[%s8 + $0x8] sm:$0xff]
        %v444 = vld [vmem:[%s8 + $0x10] sm:$0xff]
        %v445 = vld [vmem:[%s8 + $0x18] sm:$0xff]
        %v446 = vld [vmem:[%s8 + $0x20] sm:$0xff]
        %v447 = vld [vmem:[%s8 + $0x28] sm:$0xff]
        %v448 = vld [vmem:[%s8 + $0x30] sm:$0xff]
        %v449 = vld [vmem:[%s8 + $0x38] sm:$0xff]
        %v450 = vld [vmem:[%s8 + $0x40] sm:$0xff]
        %v451 = vld [vmem:[%s8 + $0x48] sm:$0xff]
        %v452 = vld [vmem:[%s8 + $0x50] sm:$0xff]
        %v453 = vld [vmem:[%s8 + $0x58] sm:$0xff]
        %v454 = vld [vmem:[%s8 + $0x60] sm:$0xf]
        %v455 = vld [vmem:[%s9] sm:$0xff]
        %v456 = vld [vmem:[%s9 + $0x8] sm:$0xff]
        %v457 = vld [vmem:[%s9 + $0x10] sm:$0xff]
        %v458 = vld [vmem:[%s9 + $0x18] sm:$0xff]
        %v459 = vld [vmem:[%s9 + $0x20] sm:$0xff]
        %v460 = vld [vmem:[%s9 + $0x28] sm:$0xff]
        %v461 = vld [vmem:[%s9 + $0x30] sm:$0xff]
        %v462 = vld [vmem:[%s9 + $0x38] sm:$0xff]
        %v463 = vld [vmem:[%s9 + $0x40] sm:$0xff]
        %v464 = vld [vmem:[%s9 + $0x48] sm:$0xff]
        %v465 = vld [vmem:[%s9 + $0x50] sm:$0xff]
        %v466 = vld [vmem:[%s9 + $0x58] sm:$0xff]
        %v467 = vld [vmem:[%s9 + $0x60] sm:$0xf]
        %vm468 = vcmask 261120
        %v470 = vsel %vm468, %v423, 0
        %472 = vmatprep.subr.mxu0 0.0
        %473 = vmatpush1.msra.mxu0 %v428
        %474 = vmatprep.subr.mxu0 0.0
        %475 = vmatpush1.msra.mxu0 %v431
        %476 = vmatprep.subr.mxu0 0.0
        %477 = vmatpush1.msra.mxu0 %v434
        %478 = vmatprep.subr.mxu0 0.0
        %479 = vmatpush1.msra.mxu0 %v437
        %480 = vmatprep.subr.mxu0 0.0
        %481 = vmatpush1.msra.mxu0 0.0
        %482 = vmatprep.subr.mxu0 0.0
        %483 = vmatpush1.msra.mxu0 0.0
        %484 = vmatprep.subr.mxu0 0.0
        %485 = vmatpush1.msra.mxu0 0.0
        %486 = vmatprep.subr.mxu0 0.0
        %487 = vmatpush1.msra.mxu0 0.0
        %488 = vmatprep.subr.mxu0 0.0
        %489 = vmatpush1.msra.mxu0 0.0
        %490 = vmatprep.subr.mxu0 0.0
        %491 = vmatpush1.msra.mxu0 0.0
        %492 = vmatprep.subr.mxu0 0.0
        %493 = vmatpush1.msra.mxu0 0.0
        %494 = vmatprep.subr.mxu0 0.0
        %495 = vmatpush1.msra.mxu0 0.0
        %496 = vmatprep.subr.mxu0 0.0
        %497 = vmatpush1.msra.mxu0 0.0
        %498 = vmatprep.subr.mxu0 0.0
        %499 = vmatpush1.msra.mxu0 0.0
        %500 = vmatprep.subr.mxu0 0.0
        %501 = vmatpush1.msra.mxu0 0.0
        %502 = vmatprep.subr.mxu0 0.0
        %503 = vmatpush1.msra.mxu0 0.0
        %504 = vmatprep.subr.mxu0 0.0
        %505 = vmatpush1.msra.mxu0 0.0
        %506 = vmatprep.subr.mxu0 0.0
        %507 = vmatpush1.msra.mxu0 0.0
        %508 = vmatprep.subr.mxu0 0.0
        %509 = vmatpush1.msra.mxu0 0.0
        %510 = vmatprep.subr.mxu0 0.0
        %511 = vmatpush1.msra.mxu0 0.0
        %512 = vmatprep.subr.mxu0 0.0
        %513 = vmatpush1.msra.mxu0 0.0
        %514 = vmatprep.subr.mxu0 0.0
        %515 = vmatpush1.msra.mxu0 0.0
        %516 = vmatprep.subr.mxu0 0.0
        %517 = vmatpush1.msra.mxu0 0.0
        %518 = vmatprep.subr.mxu0 0.0
        %519 = vmatpush1.msra.mxu0 0.0
        %520 = vmatprep.subr.mxu0 0.0
        %521 = vmatpush1.msra.mxu0 0.0
        %522 = vmatprep.subr.mxu0 0.0
        %523 = vmatpush1.msra.mxu0 0.0
        %524 = vmatprep.subr.mxu0 0.0
        %525 = vmatpush1.msra.mxu0 0.0
        %526 = vmatprep.subr.mxu0 0.0
        %527 = vmatpush1.msra.mxu0 0.0
        %528 = vmatprep.subr.mxu0 0.0
        %529 = vmatpush1.msra.mxu0 0.0
        %530 = vmatprep.subr.mxu0 0.0
        %531 = vmatpush1.msra.mxu0 0.0
        %532 = vmatprep.subr.mxu0 0.0
        %533 = vmatpush1.msra.mxu0 0.0
        %534 = vmatprep.subr.mxu0 0.0
        %535 = vmatpush1.msra.mxu0 0.0
        %536 = vmatprep.mubr.f32.mxu0 0.0
        %537 = vmatmul.mubr.f32.gmra.mrb[0].mxu0 %v470
        %v538 = vpop.f32.mrb[0].mxu0
        %v539 = vadd.f32 0.0, %v538
        %v540 = vpop.f32.mrb[0].mxu0
        %541 = vdwg.mxu0
        %543 = vrot.lane.b32.xlu0 %v539, 96
        %v544 = vpop.permute.xlu0 %543
        %546 = vxpose.xlu0.b32.start [1/16] %v544, 128
        %547 = vxpose.xlu0.b32.cont [2/16] 0.0, 128
        %548 = vxpose.xlu0.b32.cont [3/16] 0.0, 128
        %549 = vxpose.xlu0.b32.cont [4/16] 0.0, 128
        %550 = vxpose.xlu0.b32.cont [5/16] 0.0, 128
        %551 = vxpose.xlu0.b32.cont [6/16] 0.0, 128
        %552 = vxpose.xlu0.b32.cont [7/16] 0.0, 128
        %553 = vxpose.xlu0.b32.cont [8/16] 0.0, 128
        %554 = vxpose.xlu0.b32.cont [9/16] 0.0, 128
        %555 = vxpose.xlu0.b32.cont [10/16] 0.0, 128
        %556 = vxpose.xlu0.b32.cont [11/16] 0.0, 128
        %557 = vxpose.xlu0.b32.cont [12/16] 0.0, 128
        %558 = vxpose.xlu0.b32.cont [13/16] 0.0, 128
        %559 = vxpose.xlu0.b32.cont [14/16] 0.0, 128
        %560 = vxpose.xlu0.b32.cont [15/16] 0.0, 128
        %561 = vxpose.xlu0.b32.end [16/16] 0.0, 128
        %v562 = vpop.trf.xlu0
        %v563 = vpop.trf.xlu0
        %v564 = vpop.trf.xlu0
        %v565 = vpop.trf.xlu0
        %v566 = vpop.trf.xlu0
        %v567 = vpop.trf.xlu0
        %v568 = vpop.trf.xlu0
        %v569 = vpop.trf.xlu0
        %v570 = vpop.trf.xlu0
        %v571 = vpop.trf.xlu0
        %v572 = vpop.trf.xlu0
        %v573 = vpop.trf.xlu0
        %v574 = vpop.trf.xlu0
        %v575 = vpop.trf.xlu0
        %v576 = vpop.trf.xlu0
        %v577 = vpop.trf.xlu0
        %582 = vrot.lane.b32.xlu0 %v562, 8
        %v583 = vpop.permute.xlu0 %582
        %584 = vrot.lane.b32.xlu0 %v563, 8
        %v585 = vpop.permute.xlu0 %584
        %586 = vrot.lane.b32.xlu0 %v564, 8
        %v587 = vpop.permute.xlu0 %586
        %588 = vrot.lane.b32.xlu0 %v565, 8
        %v589 = vpop.permute.xlu0 %588
        %594 = vrot.lane.b32.xlu0 %v562, 16
        %v595 = vpop.permute.xlu0 %594
        %596 = vrot.lane.b32.xlu0 %v563, 16
        %v597 = vpop.permute.xlu0 %596
        %598 = vrot.lane.b32.xlu0 %v564, 16
        %v599 = vpop.permute.xlu0 %598
        %600 = vrot.lane.b32.xlu0 %v565, 16
        %v601 = vpop.permute.xlu0 %600
        %606 = vrot.lane.b32.xlu0 %v562, 24
        %v607 = vpop.permute.xlu0 %606
        %608 = vrot.lane.b32.xlu0 %v563, 24
        %v609 = vpop.permute.xlu0 %608
        %610 = vrot.lane.b32.xlu0 %v564, 24
        %v611 = vpop.permute.xlu0 %610
        %612 = vrot.lane.b32.xlu0 %v565, 24
        %v613 = vpop.permute.xlu0 %612
        %vm618 = vcmask 64512
        %v619 = vsel %vm618, %v562, %v583
        %v620 = vsel %vm618, %v563, %v585
        %v621 = vsel %vm618, %v564, %v587
        %v622 = vsel %vm618, %v565, %v589
        %vm623 = vcmask 130048
        %v624 = vsel %vm623, %v619, %v595
        %v625 = vsel %vm623, %v620, %v597
        %v626 = vsel %vm623, %v621, %v599
        %v627 = vsel %vm623, %v622, %v601
        %vm628 = vcmask 195584
        %v629 = vsel %vm628, %v624, %v607
        %v630 = vsel %vm628, %v625, %v609
        %v631 = vsel %vm628, %v626, %v611
        %v632 = vsel %vm628, %v627, %v613
        %v633 = vmul.f32 %v629, %v442
        %v634 = vmul.f32 %v630, %v443
        %v635 = vmul.f32 %v631, %v444
        %v636 = vmul.f32 %v632, %v445
        %641 = vrot.lane.b32.xlu0 %v446, 64
        %v642 = vpop.permute.xlu0 %641
        %643 = vrot.lane.b32.xlu0 %v447, 64
        %v644 = vpop.permute.xlu0 %643
        %645 = vrot.lane.b32.xlu0 %v448, 64
        %v646 = vpop.permute.xlu0 %645
        %647 = vrot.lane.b32.xlu0 %v449, 64
        %v648 = vpop.permute.xlu0 %647
        %v653 = vmul.f32 %v539, %v642
        %v654 = vmul.f32 %v539, %v644
        %v655 = vmul.f32 %v539, %v646
        %v656 = vmul.f32 %v539, %v648
        %v657 = vsel %vm468, %v539, 0
        %659 = vmatprep.subr.mxu0 0.0
        %660 = vmatpush1.msra.mxu0 %v633
        %661 = vmatprep.subr.mxu0 0.0
        %662 = vmatpush1.msra.mxu0 %v634
        %663 = vmatprep.subr.mxu0 0.0
        %664 = vmatpush1.msra.mxu0 %v635
        %665 = vmatprep.subr.mxu0 0.0
        %666 = vmatpush1.msra.mxu0 %v636
        %667 = vmatprep.subr.mxu0 0.0
        %668 = vmatpush1.msra.mxu0 0.0
        %669 = vmatprep.subr.mxu0 0.0
        %670 = vmatpush1.msra.mxu0 0.0
        %671 = vmatprep.subr.mxu0 0.0
        %672 = vmatpush1.msra.mxu0 0.0
        %673 = vmatprep.subr.mxu0 0.0
        %674 = vmatpush1.msra.mxu0 0.0
        %675 = vmatprep.subr.mxu0 0.0
        %676 = vmatpush1.msra.mxu0 0.0
        %677 = vmatprep.subr.mxu0 0.0
        %678 = vmatpush1.msra.mxu0 0.0
        %679 = vmatprep.subr.mxu0 0.0
        %680 = vmatpush1.msra.mxu0 0.0
        %681 = vmatprep.subr.mxu0 0.0
        %682 = vmatpush1.msra.mxu0 0.0
        %683 = vmatprep.subr.mxu0 0.0
        %684 = vmatpush1.msra.mxu0 0.0
        %685 = vmatprep.subr.mxu0 0.0
        %686 = vmatpush1.msra.mxu0 0.0
        %687 = vmatprep.subr.mxu0 0.0
        %688 = vmatpush1.msra.mxu0 0.0
        %689 = vmatprep.subr.mxu0 0.0
        %690 = vmatpush1.msra.mxu0 0.0
        %691 = vmatprep.subr.mxu0 0.0
        %692 = vmatpush1.msra.mxu0 0.0
        %693 = vmatprep.subr.mxu0 0.0
        %694 = vmatpush1.msra.mxu0 0.0
        %695 = vmatprep.subr.mxu0 0.0
        %696 = vmatpush1.msra.mxu0 0.0
        %697 = vmatprep.subr.mxu0 0.0
        %698 = vmatpush1.msra.mxu0 0.0
        %699 = vmatprep.subr.mxu0 0.0
        %700 = vmatpush1.msra.mxu0 0.0
        %701 = vmatprep.subr.mxu0 0.0
        %702 = vmatpush1.msra.mxu0 0.0
        %703 = vmatprep.subr.mxu0 0.0
        %704 = vmatpush1.msra.mxu0 0.0
        %705 = vmatprep.subr.mxu0 0.0
        %706 = vmatpush1.msra.mxu0 0.0
        %707 = vmatprep.subr.mxu0 0.0
        %708 = vmatpush1.msra.mxu0 0.0
        %709 = vmatprep.subr.mxu0 0.0
        %710 = vmatpush1.msra.mxu0 0.0
        %711 = vmatprep.subr.mxu0 0.0
        %712 = vmatpush1.msra.mxu0 0.0
        %713 = vmatprep.subr.mxu0 0.0
        %714 = vmatpush1.msra.mxu0 0.0
        %715 = vmatprep.subr.mxu0 0.0
        %716 = vmatpush1.msra.mxu0 0.0
        %717 = vmatprep.subr.mxu0 0.0
        %718 = vmatpush1.msra.mxu0 0.0
        %719 = vmatprep.subr.mxu0 0.0
        %720 = vmatpush1.msra.mxu0 0.0
        %721 = vmatprep.subr.mxu0 0.0
        %722 = vmatpush1.msra.mxu0 0.0
        %723 = vmatprep.mubr.f32.mxu0 0.0
        %724 = vmatmul.mubr.f32.gmra.mrb[0].mxu0 %v657
        %v725 = vpop.f32.mrb[0].mxu0
        %v726 = vadd.f32 %v426, %v725
        %v727 = vpop.f32.mrb[0].mxu0
        %728 = vdwg.mxu0
        %v729 = vsel %vm468, %v726, -inf
        %730 = vmax.xlane.f32.xlu0 %v729
        %v731 = vpop.xlane.xlu0 %730
        %v732 = vsub.f32 %v726, %v731
        %v733 = vmul.f32 %v732, 1.442695
        %v734 = vpow.pop %v733
        %v736 = vsel %vm468, %v734, 0
        %738 = vmatprep.subr.mxu0 0.0
        %739 = vmatpush1.msra.mxu0 %v450
        %740 = vmatprep.subr.mxu0 0.0
        %741 = vmatpush1.msra.mxu0 %v451
        %742 = vmatprep.subr.mxu0 0.0
        %743 = vmatpush1.msra.mxu0 %v452
        %744 = vmatprep.subr.mxu0 0.0
        %745 = vmatpush1.msra.mxu0 %v453
        %746 = vmatprep.subr.mxu0 0.0
        %747 = vmatpush1.msra.mxu0 0.0
        %748 = vmatprep.subr.mxu0 0.0
        %749 = vmatpush1.msra.mxu0 0.0
        %750 = vmatprep.subr.mxu0 0.0
        %751 = vmatpush1.msra.mxu0 0.0
        %752 = vmatprep.subr.mxu0 0.0
        %753 = vmatpush1.msra.mxu0 0.0
        %754 = vmatprep.subr.mxu0 0.0
        %755 = vmatpush1.msra.mxu0 0.0
        %756 = vmatprep.subr.mxu0 0.0
        %757 = vmatpush1.msra.mxu0 0.0
        %758 = vmatprep.subr.mxu0 0.0
        %759 = vmatpush1.msra.mxu0 0.0
        %760 = vmatprep.subr.mxu0 0.0
        %761 = vmatpush1.msra.mxu0 0.0
        %762 = vmatprep.subr.mxu0 0.0
        %763 = vmatpush1.msra.mxu0 0.0
        %764 = vmatprep.subr.mxu0 0.0
        %765 = vmatpush1.msra.mxu0 0.0
        %766 = vmatprep.subr.mxu0 0.0
        %767 = vmatpush1.msra.mxu0 0.0
        %768 = vmatprep.subr.mxu0 0.0
        %769 = vmatpush1.msra.mxu0 0.0
        %770 = vmatprep.subr.mxu0 0.0
        %771 = vmatpush1.msra.mxu0 0.0
        %772 = vmatprep.subr.mxu0 0.0
        %773 = vmatpush1.msra.mxu0 0.0
        %774 = vmatprep.subr.mxu0 0.0
        %775 = vmatpush1.msra.mxu0 0.0
        %776 = vmatprep.subr.mxu0 0.0
        %777 = vmatpush1.msra.mxu0 0.0
        %778 = vmatprep.subr.mxu0 0.0
        %779 = vmatpush1.msra.mxu0 0.0
        %780 = vmatprep.subr.mxu0 0.0
        %781 = vmatpush1.msra.mxu0 0.0
        %782 = vmatprep.subr.mxu0 0.0
        %783 = vmatpush1.msra.mxu0 0.0
        %784 = vmatprep.subr.mxu0 0.0
        %785 = vmatpush1.msra.mxu0 0.0
        %786 = vmatprep.subr.mxu0 0.0
        %787 = vmatpush1.msra.mxu0 0.0
        %788 = vmatprep.subr.mxu0 0.0
        %789 = vmatpush1.msra.mxu0 0.0
        %790 = vmatprep.subr.mxu0 0.0
        %791 = vmatpush1.msra.mxu0 0.0
        %792 = vmatprep.subr.mxu0 0.0
        %793 = vmatpush1.msra.mxu0 0.0
        %794 = vmatprep.subr.mxu0 0.0
        %795 = vmatpush1.msra.mxu0 0.0
        %796 = vmatprep.subr.mxu0 0.0
        %797 = vmatpush1.msra.mxu0 0.0
        %798 = vmatprep.subr.mxu0 0.0
        %799 = vmatpush1.msra.mxu0 0.0
        %800 = vmatprep.subr.mxu0 0.0
        %801 = vmatpush1.msra.mxu0 0.0
        %802 = vmatprep.mubr.f32.mxu0 0.0
        %803 = vmatmul.mubr.f32.gmra.mrb[0].mxu0 %v736
        %v804 = vpop.f32.mrb[0].mxu0
        %v805 = vadd.f32 0.0, %v804
        %v806 = vpop.f32.mrb[0].mxu0
        %807 = vdwg.mxu0
        %vm808 = vcmask 31744
        %v810 = vsel %vm808, %v805, 0
        %vm812 = vcmask 1043456
        %v814 = vsel %vm812, %v454, 0
        %816 = vmatprep.subr.mxu0 0.0
        %817 = vmatpush1.msra.mxu0 %v814
        %818 = vmatprep.subr.mxu0 0.0
        %819 = vmatpush1.msra.mxu0 0.0
        %820 = vmatprep.subr.mxu0 0.0
        %821 = vmatpush1.msra.mxu0 0.0
        %822 = vmatprep.subr.mxu0 0.0
        %823 = vmatpush1.msra.mxu0 0.0
        %824 = vmatprep.subr.mxu0 0.0
        %825 = vmatpush1.msra.mxu0 0.0
        %826 = vmatprep.subr.mxu0 0.0
        %827 = vmatpush1.msra.mxu0 0.0
        %828 = vmatprep.subr.mxu0 0.0
        %829 = vmatpush1.msra.mxu0 0.0
        %830 = vmatprep.subr.mxu0 0.0
        %831 = vmatpush1.msra.mxu0 0.0
        %832 = vmatprep.subr.mxu0 0.0
        %833 = vmatpush1.msra.mxu0 0.0
        %834 = vmatprep.subr.mxu0 0.0
        %835 = vmatpush1.msra.mxu0 0.0
        %836 = vmatprep.subr.mxu0 0.0
        %837 = vmatpush1.msra.mxu0 0.0
        %838 = vmatprep.subr.mxu0 0.0
        %839 = vmatpush1.msra.mxu0 0.0
        %840 = vmatprep.subr.mxu0 0.0
        %841 = vmatpush1.msra.mxu0 0.0
        %842 = vmatprep.subr.mxu0 0.0
        %843 = vmatpush1.msra.mxu0 0.0
        %844 = vmatprep.subr.mxu0 0.0
        %845 = vmatpush1.msra.mxu0 0.0
        %846 = vmatprep.subr.mxu0 0.0
        %847 = vmatpush1.msra.mxu0 0.0
        %848 = vmatprep.subr.mxu0 0.0
        %849 = vmatpush1.msra.mxu0 0.0
        %850 = vmatprep.subr.mxu0 0.0
        %851 = vmatpush1.msra.mxu0 0.0
        %852 = vmatprep.subr.mxu0 0.0
        %853 = vmatpush1.msra.mxu0 0.0
        %854 = vmatprep.subr.mxu0 0.0
        %855 = vmatpush1.msra.mxu0 0.0
        %856 = vmatprep.subr.mxu0 0.0
        %857 = vmatpush1.msra.mxu0 0.0
        %858 = vmatprep.subr.mxu0 0.0
        %859 = vmatpush1.msra.mxu0 0.0
        %860 = vmatprep.subr.mxu0 0.0
        %861 = vmatpush1.msra.mxu0 0.0
        %862 = vmatprep.subr.mxu0 0.0
        %863 = vmatpush1.msra.mxu0 0.0
        %864 = vmatprep.subr.mxu0 0.0
        %865 = vmatpush1.msra.mxu0 0.0
        %866 = vmatprep.subr.mxu0 0.0
        %867 = vmatpush1.msra.mxu0 0.0
        %868 = vmatprep.subr.mxu0 0.0
        %869 = vmatpush1.msra.mxu0 0.0
        %870 = vmatprep.subr.mxu0 0.0
        %871 = vmatpush1.msra.mxu0 0.0
        %872 = vmatprep.subr.mxu0 0.0
        %873 = vmatpush1.msra.mxu0 0.0
        %874 = vmatprep.subr.mxu0 0.0
        %875 = vmatpush1.msra.mxu0 0.0
        %876 = vmatprep.subr.mxu0 0.0
        %877 = vmatpush1.msra.mxu0 0.0
        %878 = vmatprep.subr.mxu0 0.0
        %879 = vmatpush1.msra.mxu0 0.0
        %880 = vmatprep.mubr.f32.mxu0 0.0
        %881 = vmatmul.mubr.f32.gmra.mrb[0].mxu0 %v810
        %v882 = vpop.f32.mrb[0].mxu0
        %v883 = vadd.f32 0.0, %v882
        %v884 = vpop.f32.mrb[0].mxu0
        %885 = vdwg.mxu0
        %v886 = vrcp.pop %v883
        %v887 = vmul.f32 %v734, %v886
        %892 = vrot.lane.b32.xlu0 %v653, 64
        %v893 = vpop.permute.xlu0 %892
        %894 = vrot.lane.b32.xlu0 %v654, 64
        %v895 = vpop.permute.xlu0 %894
        %896 = vrot.lane.b32.xlu0 %v655, 64
        %v897 = vpop.permute.xlu0 %896
        %898 = vrot.lane.b32.xlu0 %v656, 64
        %v899 = vpop.permute.xlu0 %898
        %v905 = vsel %vm468, %v887, 0
        %907 = vmatprep.subr.mxu0 0.0
        %908 = vmatpush1.msra.mxu0 %v893
        %909 = vmatprep.subr.mxu0 0.0
        %910 = vmatpush1.msra.mxu0 %v895
        %911 = vmatprep.subr.mxu0 0.0
        %912 = vmatpush1.msra.mxu0 %v897
        %913 = vmatprep.subr.mxu0 0.0
        %914 = vmatpush1.msra.mxu0 %v899
        %915 = vmatprep.subr.mxu0 0.0
        %916 = vmatpush1.msra.mxu0 0.0
        %917 = vmatprep.subr.mxu0 0.0
        %918 = vmatpush1.msra.mxu0 0.0
        %919 = vmatprep.subr.mxu0 0.0
        %920 = vmatpush1.msra.mxu0 0.0
        %921 = vmatprep.subr.mxu0 0.0
        %922 = vmatpush1.msra.mxu0 0.0
        %923 = vmatprep.subr.mxu0 0.0
        %924 = vmatpush1.msra.mxu0 0.0
        %925 = vmatprep.subr.mxu0 0.0
        %926 = vmatpush1.msra.mxu0 0.0
        %927 = vmatprep.subr.mxu0 0.0
        %928 = vmatpush1.msra.mxu0 0.0
        %929 = vmatprep.subr.mxu0 0.0
        %930 = vmatpush1.msra.mxu0 0.0
        %931 = vmatprep.subr.mxu0 0.0
        %932 = vmatpush1.msra.mxu0 0.0
        %933 = vmatprep.subr.mxu0 0.0
        %934 = vmatpush1.msra.mxu0 0.0
        %935 = vmatprep.subr.mxu0 0.0
        %936 = vmatpush1.msra.mxu0 0.0
        %937 = vmatprep.subr.mxu0 0.0
        %938 = vmatpush1.msra.mxu0 0.0
        %939 = vmatprep.subr.mxu0 0.0
        %940 = vmatpush1.msra.mxu0 0.0
        %941 = vmatprep.subr.mxu0 0.0
        %942 = vmatpush1.msra.mxu0 0.0
        %943 = vmatprep.subr.mxu0 0.0
        %944 = vmatpush1.msra.mxu0 0.0
        %945 = vmatprep.subr.mxu0 0.0
        %946 = vmatpush1.msra.mxu0 0.0
        %947 = vmatprep.subr.mxu0 0.0
        %948 = vmatpush1.msra.mxu0 0.0
        %949 = vmatprep.subr.mxu0 0.0
        %950 = vmatpush1.msra.mxu0 0.0
        %951 = vmatprep.subr.mxu0 0.0
        %952 = vmatpush1.msra.mxu0 0.0
        %953 = vmatprep.subr.mxu0 0.0
        %954 = vmatpush1.msra.mxu0 0.0
        %955 = vmatprep.subr.mxu0 0.0
        %956 = vmatpush1.msra.mxu0 0.0
        %957 = vmatprep.subr.mxu0 0.0
        %958 = vmatpush1.msra.mxu0 0.0
        %959 = vmatprep.subr.mxu0 0.0
        %960 = vmatpush1.msra.mxu0 0.0
        %961 = vmatprep.subr.mxu0 0.0
        %962 = vmatpush1.msra.mxu0 0.0
        %963 = vmatprep.subr.mxu0 0.0
        %964 = vmatpush1.msra.mxu0 0.0
        %965 = vmatprep.subr.mxu0 0.0
        %966 = vmatpush1.msra.mxu0 0.0
        %967 = vmatprep.subr.mxu0 0.0
        %968 = vmatpush1.msra.mxu0 0.0
        %969 = vmatprep.subr.mxu0 0.0
        %970 = vmatpush1.msra.mxu0 0.0
        %971 = vmatprep.mubr.f32.mxu0 0.0
        %972 = vmatmul.mubr.f32.gmra.mrb[0].mxu0 %v905
        %v973 = vpop.f32.mrb[0].mxu0
        %v974 = vadd.f32 0.0, %v973
        %v975 = vpop.f32.mrb[0].mxu0
        %976 = vdwg.mxu0
        %v977 = vlaneseq
        %v978 = vshrl.u32 %v977, 7
        %v979 = vsub.s32 0, %v978
        %v980 = vrot.slane %v440, %v979
        %985 = vrot.lane.b32.xlu0 %v428, 32
        %v986 = vpop.permute.xlu0 %985
        %987 = vrot.lane.b32.xlu0 %v431, 32
        %v988 = vpop.permute.xlu0 %987
        %989 = vrot.lane.b32.xlu0 %v434, 32
        %v990 = vpop.permute.xlu0 %989
        %991 = vrot.lane.b32.xlu0 %v437, 32
        %v992 = vpop.permute.xlu0 %991
        %v998 = vsel %vm468, %v974, 0
        %1000 = vmatprep.subr.mxu0 0.0
        %1001 = vmatpush1.msra.mxu0 %v986
        %1002 = vmatprep.subr.mxu0 0.0
        %1003 = vmatpush1.msra.mxu0 %v988
        %1004 = vmatprep.subr.mxu0 0.0
        %1005 = vmatpush1.msra.mxu0 %v990
        %1006 = vmatprep.subr.mxu0 0.0
        %1007 = vmatpush1.msra.mxu0 %v992
        %1008 = vmatprep.subr.mxu0 0.0
        %1009 = vmatpush1.msra.mxu0 0.0
        %1010 = vmatprep.subr.mxu0 0.0
        %1011 = vmatpush1.msra.mxu0 0.0
        %1012 = vmatprep.subr.mxu0 0.0
        %1013 = vmatpush1.msra.mxu0 0.0
        %1014 = vmatprep.subr.mxu0 0.0
        %1015 = vmatpush1.msra.mxu0 0.0
        %1016 = vmatprep.subr.mxu0 0.0
        %1017 = vmatpush1.msra.mxu0 0.0
        %1018 = vmatprep.subr.mxu0 0.0
        %1019 = vmatpush1.msra.mxu0 0.0
        %1020 = vmatprep.subr.mxu0 0.0
        %1021 = vmatpush1.msra.mxu0 0.0
        %1022 = vmatprep.subr.mxu0 0.0
        %1023 = vmatpush1.msra.mxu0 0.0
        %1024 = vmatprep.subr.mxu0 0.0
        %1025 = vmatpush1.msra.mxu0 0.0
        %1026 = vmatprep.subr.mxu0 0.0
        %1027 = vmatpush1.msra.mxu0 0.0
        %1028 = vmatprep.subr.mxu0 0.0
        %1029 = vmatpush1.msra.mxu0 0.0
        %1030 = vmatprep.subr.mxu0 0.0
        %1031 = vmatpush1.msra.mxu0 0.0
        %1032 = vmatprep.subr.mxu0 0.0
        %1033 = vmatpush1.msra.mxu0 0.0
        %1034 = vmatprep.subr.mxu0 0.0
        %1035 = vmatpush1.msra.mxu0 0.0
        %1036 = vmatprep.subr.mxu0 0.0
        %1037 = vmatpush1.msra.mxu0 0.0
        %1038 = vmatprep.subr.mxu0 0.0
        %1039 = vmatpush1.msra.mxu0 0.0
        %1040 = vmatprep.subr.mxu0 0.0
        %1041 = vmatpush1.msra.mxu0 0.0
        %1042 = vmatprep.subr.mxu0 0.0
        %1043 = vmatpush1.msra.mxu0 0.0
        %1044 = vmatprep.subr.mxu0 0.0
        %1045 = vmatpush1.msra.mxu0 0.0
        %1046 = vmatprep.subr.mxu0 0.0
        %1047 = vmatpush1.msra.mxu0 0.0
        %1048 = vmatprep.subr.mxu0 0.0
        %1049 = vmatpush1.msra.mxu0 0.0
        %1050 = vmatprep.subr.mxu0 0.0
        %1051 = vmatpush1.msra.mxu0 0.0
        %1052 = vmatprep.subr.mxu0 0.0
        %1053 = vmatpush1.msra.mxu0 0.0
        %1054 = vmatprep.subr.mxu0 0.0
        %1055 = vmatpush1.msra.mxu0 0.0
        %1056 = vmatprep.subr.mxu0 0.0
        %1057 = vmatpush1.msra.mxu0 0.0
        %1058 = vmatprep.subr.mxu0 0.0
        %1059 = vmatpush1.msra.mxu0 0.0
        %1060 = vmatprep.subr.mxu0 0.0
        %1061 = vmatpush1.msra.mxu0 0.0
        %1062 = vmatprep.subr.mxu0 0.0
        %1063 = vmatpush1.msra.mxu0 0.0
        %1064 = vmatprep.mubr.f32.mxu0 0.0
        %1065 = vmatmul.mubr.f32.gmra.mrb[0].mxu0 %v998
        %v1066 = vpop.f32.mrb[0].mxu0
        %v1067 = vadd.f32 %v980, %v1066
        %v1068 = vpop.f32.mrb[0].mxu0
        %1069 = vdwg.mxu0
        %v1070 = vadd.f32 %v1067, %v423
        %v1071 = vsel %vm468, %v1070, 0.0
        %1072 = vadd.xlane.f32.xlu0 %v1071
        %v1073 = vpop.xlane.xlu0 %1072
        %v1074 = vrcp.pop 32.0
        %v1075 = vmul.f32 %v1073, %v1074
        %v1076 = vsub.f32 %v1070, %v1075
        %v1077 = vmul.f32 %v1076, %v1076
        %v1078 = vsel %vm468, %v1077, 0.0
        %1079 = vadd.xlane.f32.xlu0 %v1078
        %v1080 = vpop.xlane.xlu0 %1079
        %v1081 = vmul.f32 %v1080, %v1074
        %v1082 = vadd.f32 %v1081, 1e-05
        %v1083 = vrsqrt.pop %v1082
        %v1084 = vmul.f32 %v1076, %v1083
        %v1085 = vlaneseq
        %v1086 = vshrl.u32 %v1085, 7
        %v1087 = vsub.s32 1, %v1086
        %v1088 = vrot.slane %v440, %v1087
        %v1089 = vmul.f32 %v1084, %v1088
        %v1090 = vlaneseq
        %v1091 = vshrl.u32 %v1090, 7
        %v1092 = vsub.s32 2, %v1091
        %v1093 = vrot.slane %v440, %v1092
        %v1094 = vadd.f32 %v1089, %v1093
        %v1096 = vsel %vm468, %v1094, 0
        %1098 = vmatprep.subr.mxu0 0.0
        %1099 = vmatpush1.msra.mxu0 %v429
        %1100 = vmatprep.subr.mxu0 0.0
        %1101 = vmatpush1.msra.mxu0 %v432
        %1102 = vmatprep.subr.mxu0 0.0
        %1103 = vmatpush1.msra.mxu0 %v435
        %1104 = vmatprep.subr.mxu0 0.0
        %1105 = vmatpush1.msra.mxu0 %v438
        %1106 = vmatprep.subr.mxu0 0.0
        %1107 = vmatpush1.msra.mxu0 0.0
        %1108 = vmatprep.subr.mxu0 0.0
        %1109 = vmatpush1.msra.mxu0 0.0
        %1110 = vmatprep.subr.mxu0 0.0
        %1111 = vmatpush1.msra.mxu0 0.0
        %1112 = vmatprep.subr.mxu0 0.0
        %1113 = vmatpush1.msra.mxu0 0.0
        %1114 = vmatprep.subr.mxu0 0.0
        %1115 = vmatpush1.msra.mxu0 0.0
        %1116 = vmatprep.subr.mxu0 0.0
        %1117 = vmatpush1.msra.mxu0 0.0
        %1118 = vmatprep.subr.mxu0 0.0
        %1119 = vmatpush1.msra.mxu0 0.0
        %1120 = vmatprep.subr.mxu0 0.0
        %1121 = vmatpush1.msra.mxu0 0.0
        %1122 = vmatprep.subr.mxu0 0.0
        %1123 = vmatpush1.msra.mxu0 0.0
        %1124 = vmatprep.subr.mxu0 0.0
        %1125 = vmatpush1.msra.mxu0 0.0
        %1126 = vmatprep.subr.mxu0 0.0
        %1127 = vmatpush1.msra.mxu0 0.0
        %1128 = vmatprep.subr.mxu0 0.0
        %1129 = vmatpush1.msra.mxu0 0.0
        %1130 = vmatprep.subr.mxu0 0.0
        %1131 = vmatpush1.msra.mxu0 0.0
        %1132 = vmatprep.subr.mxu0 0.0
        %1133 = vmatpush1.msra.mxu0 0.0
        %1134 = vmatprep.subr.mxu0 0.0
        %1135 = vmatpush1.msra.mxu0 0.0
        %1136 = vmatprep.subr.mxu0 0.0
        %1137 = vmatpush1.msra.mxu0 0.0
        %1138 = vmatprep.subr.mxu0 0.0
        %1139 = vmatpush1.msra.mxu0 0.0
        %1140 = vmatprep.subr.mxu0 0.0
        %1141 = vmatpush1.msra.mxu0 0.0
        %1142 = vmatprep.subr.mxu0 0.0
        %1143 = vmatpush1.msra.mxu0 0.0
        %1144 = vmatprep.subr.mxu0 0.0
        %1145 = vmatpush1.msra.mxu0 0.0
        %1146 = vmatprep.subr.mxu0 0.0
        %1147 = vmatpush1.msra.mxu0 0.0
        %1148 = vmatprep.subr.mxu0 0.0
        %1149 = vmatpush1.msra.mxu0 0.0
        %1150 = vmatprep.subr.mxu0 0.0
        %1151 = vmatpush1.msra.mxu0 0.0
        %1152 = vmatprep.subr.mxu0 0.0
        %1153 = vmatpush1.msra.mxu0 0.0
        %1154 = vmatprep.subr.mxu0 0.0
        %1155 = vmatpush1.msra.mxu0 0.0
        %1156 = vmatprep.subr.mxu0 0.0
        %1157 = vmatpush1.msra.mxu0 0.0
        %1158 = vmatprep.subr.mxu0 0.0
        %1159 = vmatpush1.msra.mxu0 0.0
        %1160 = vmatprep.subr.mxu0 0.0
        %1161 = vmatpush1.msra.mxu0 0.0
        %1162 = vmatprep.mubr.f32.mxu0 0.0
        %1163 = vmatmul.mubr.f32.gmra.mrb[0].mxu0 %v1096
        %v1164 = vpop.f32.mrb[0].mxu0
        %v1165 = vadd.f32 0.0, %v1164
        %v1166 = vpop.f32.mrb[0].mxu0
        %1167 = vdwg.mxu0
        %1172 = vrot.lane.b32.xlu0 %v429, 96
        %v1173 = vpop.permute.xlu0 %1172
        %1174 = vrot.lane.b32.xlu0 %v432, 96
        %v1175 = vpop.permute.xlu0 %1174
        %1176 = vrot.lane.b32.xlu0 %v435, 96
        %v1177 = vpop.permute.xlu0 %1176
        %1178 = vrot.lane.b32.xlu0 %v438, 96
        %v1179 = vpop.permute.xlu0 %1178
        %v1185 = vsel %vm468, %v425, 0
        %1187 = vmatprep.subr.mxu0 0.0
        %1188 = vmatpush1.msra.mxu0 %v1173
        %1189 = vmatprep.subr.mxu0 0.0
        %1190 = vmatpush1.msra.mxu0 %v1175
        %1191 = vmatprep.subr.mxu0 0.0
        %1192 = vmatpush1.msra.mxu0 %v1177
        %1193 = vmatprep.subr.mxu0 0.0
        %1194 = vmatpush1.msra.mxu0 %v1179
        %1195 = vmatprep.subr.mxu0 0.0
        %1196 = vmatpush1.msra.mxu0 0.0
        %1197 = vmatprep.subr.mxu0 0.0
        %1198 = vmatpush1.msra.mxu0 0.0
        %1199 = vmatprep.subr.mxu0 0.0
        %1200 = vmatpush1.msra.mxu0 0.0
        %1201 = vmatprep.subr.mxu0 0.0
        %1202 = vmatpush1.msra.mxu0 0.0
        %1203 = vmatprep.subr.mxu0 0.0
        %1204 = vmatpush1.msra.mxu0 0.0
        %1205 = vmatprep.subr.mxu0 0.0
        %1206 = vmatpush1.msra.mxu0 0.0
        %1207 = vmatprep.subr.mxu0 0.0
        %1208 = vmatpush1.msra.mxu0 0.0
        %1209 = vmatprep.subr.mxu0 0.0
        %1210 = vmatpush1.msra.mxu0 0.0
        %1211 = vmatprep.subr.mxu0 0.0
        %1212 = vmatpush1.msra.mxu0 0.0
        %1213 = vmatprep.subr.mxu0 0.0
        %1214 = vmatpush1.msra.mxu0 0.0
        %1215 = vmatprep.subr.mxu0 0.0
        %1216 = vmatpush1.msra.mxu0 0.0
        %1217 = vmatprep.subr.mxu0 0.0
        %1218 = vmatpush1.msra.mxu0 0.0
        %1219 = vmatprep.subr.mxu0 0.0
        %1220 = vmatpush1.msra.mxu0 0.0
        %1221 = vmatprep.subr.mxu0 0.0
        %1222 = vmatpush1.msra.mxu0 0.0
        %1223 = vmatprep.subr.mxu0 0.0
        %1224 = vmatpush1.msra.mxu0 0.0
        %1225 = vmatprep.subr.mxu0 0.0
        %1226 = vmatpush1.msra.mxu0 0.0
        %1227 = vmatprep.subr.mxu0 0.0
        %1228 = vmatpush1.msra.mxu0 0.0
        %1229 = vmatprep.subr.mxu0 0.0
        %1230 = vmatpush1.msra.mxu0 0.0
        %1231 = vmatprep.subr.mxu0 0.0
        %1232 = vmatpush1.msra.mxu0 0.0
        %1233 = vmatprep.subr.mxu0 0.0
        %1234 = vmatpush1.msra.mxu0 0.0
        %1235 = vmatprep.subr.mxu0 0.0
        %1236 = vmatpush1.msra.mxu0 0.0
        %1237 = vmatprep.subr.mxu0 0.0
        %1238 = vmatpush1.msra.mxu0 0.0
        %1239 = vmatprep.subr.mxu0 0.0
        %1240 = vmatpush1.msra.mxu0 0.0
        %1241 = vmatprep.subr.mxu0 0.0
        %1242 = vmatpush1.msra.mxu0 0.0
        %1243 = vmatprep.subr.mxu0 0.0
        %1244 = vmatpush1.msra.mxu0 0.0
        %1245 = vmatprep.subr.mxu0 0.0
        %1246 = vmatpush1.msra.mxu0 0.0
        %1247 = vmatprep.subr.mxu0 0.0
        %1248 = vmatpush1.msra.mxu0 0.0
        %1249 = vmatprep.subr.mxu0 0.0
        %1250 = vmatpush1.msra.mxu0 0.0
        %1251 = vmatprep.mubr.f32.mxu0 0.0
        %1252 = vmatmul.mubr.f32.gmra.mrb[0].mxu0 %v1185
        %v1253 = vpop.f32.mrb[0].mxu0
        %v1254 = vadd.f32 0.0, %v1253
        %v1255 = vpop.f32.mrb[0].mxu0
        %1256 = vdwg.mxu0
        %1257 = vrot.lane.b32.xlu0 %v429, 64
        %v1258 = vpop.permute.xlu0 %1257
        %1259 = vrot.lane.b32.xlu0 %v432, 64
        %v1260 = vpop.permute.xlu0 %1259
        %1261 = vrot.lane.b32.xlu0 %v435, 64
        %v1262 = vpop.permute.xlu0 %1261
        %1263 = vrot.lane.b32.xlu0 %v438, 64
        %v1264 = vpop.permute.xlu0 %1263
        %v1270 = vsel %vm468, %v424, 0
        %1272 = vmatprep.subr.mxu0 0.0
        %1273 = vmatpush1.msra.mxu0 %v1258
        %1274 = vmatprep.subr.mxu0 0.0
        %1275 = vmatpush1.msra.mxu0 %v1260
        %1276 = vmatprep.subr.mxu0 0.0
        %1277 = vmatpush1.msra.mxu0 %v1262
        %1278 = vmatprep.subr.mxu0 0.0
        %1279 = vmatpush1.msra.mxu0 %v1264
        %1280 = vmatprep.subr.mxu0 0.0
        %1281 = vmatpush1.msra.mxu0 0.0
        %1282 = vmatprep.subr.mxu0 0.0
        %1283 = vmatpush1.msra.mxu0 0.0
        %1284 = vmatprep.subr.mxu0 0.0
        %1285 = vmatpush1.msra.mxu0 0.0
        %1286 = vmatprep.subr.mxu0 0.0
        %1287 = vmatpush1.msra.mxu0 0.0
        %1288 = vmatprep.subr.mxu0 0.0
        %1289 = vmatpush1.msra.mxu0 0.0
        %1290 = vmatprep.subr.mxu0 0.0
        %1291 = vmatpush1.msra.mxu0 0.0
        %1292 = vmatprep.subr.mxu0 0.0
        %1293 = vmatpush1.msra.mxu0 0.0
        %1294 = vmatprep.subr.mxu0 0.0
        %1295 = vmatpush1.msra.mxu0 0.0
        %1296 = vmatprep.subr.mxu0 0.0
        %1297 = vmatpush1.msra.mxu0 0.0
        %1298 = vmatprep.subr.mxu0 0.0
        %1299 = vmatpush1.msra.mxu0 0.0
        %1300 = vmatprep.subr.mxu0 0.0
        %1301 = vmatpush1.msra.mxu0 0.0
        %1302 = vmatprep.subr.mxu0 0.0
        %1303 = vmatpush1.msra.mxu0 0.0
        %1304 = vmatprep.subr.mxu0 0.0
        %1305 = vmatpush1.msra.mxu0 0.0
        %1306 = vmatprep.subr.mxu0 0.0
        %1307 = vmatpush1.msra.mxu0 0.0
        %1308 = vmatprep.subr.mxu0 0.0
        %1309 = vmatpush1.msra.mxu0 0.0
        %1310 = vmatprep.subr.mxu0 0.0
        %1311 = vmatpush1.msra.mxu0 0.0
        %1312 = vmatprep.subr.mxu0 0.0
        %1313 = vmatpush1.msra.mxu0 0.0
        %1314 = vmatprep.subr.mxu0 0.0
        %1315 = vmatpush1.msra.mxu0 0.0
        %1316 = vmatprep.subr.mxu0 0.0
        %1317 = vmatpush1.msra.mxu0 0.0
        %1318 = vmatprep.subr.mxu0 0.0
        %1319 = vmatpush1.msra.mxu0 0.0
        %1320 = vmatprep.subr.mxu0 0.0
        %1321 = vmatpush1.msra.mxu0 0.0
        %1322 = vmatprep.subr.mxu0 0.0
        %1323 = vmatpush1.msra.mxu0 0.0
        %1324 = vmatprep.subr.mxu0 0.0
        %1325 = vmatpush1.msra.mxu0 0.0
        %1326 = vmatprep.subr.mxu0 0.0
        %1327 = vmatpush1.msra.mxu0 0.0
        %1328 = vmatprep.subr.mxu0 0.0
        %1329 = vmatpush1.msra.mxu0 0.0
        %1330 = vmatprep.subr.mxu0 0.0
        %1331 = vmatpush1.msra.mxu0 0.0
        %1332 = vmatprep.subr.mxu0 0.0
        %1333 = vmatpush1.msra.mxu0 0.0
        %1334 = vmatprep.subr.mxu0 0.0
        %1335 = vmatpush1.msra.mxu0 0.0
        %1336 = vmatprep.mubr.f32.mxu0 0.0
        %1337 = vmatmul.mubr.f32.gmra.mrb[0].mxu0 %v1270
        %v1338 = vpop.f32.mrb[0].mxu0
        %v1339 = vadd.f32 0.0, %v1338
        %v1340 = vpop.f32.mrb[0].mxu0
        %1341 = vdwg.mxu0
        %1342 = vxpose.xlu0.b32.start [1/16] %v1254, 128
        %1343 = vxpose.xlu0.b32.cont [2/16] 0.0, 128
        %1344 = vxpose.xlu0.b32.cont [3/16] 0.0, 128
        %1345 = vxpose.xlu0.b32.cont [4/16] 0.0, 128
        %1346 = vxpose.xlu0.b32.cont [5/16] 0.0, 128
        %1347 = vxpose.xlu0.b32.cont [6/16] 0.0, 128
        %1348 = vxpose.xlu0.b32.cont [7/16] 0.0, 128
        %1349 = vxpose.xlu0.b32.cont [8/16] 0.0, 128
        %1350 = vxpose.xlu0.b32.cont [9/16] 0.0, 128
        %1351 = vxpose.xlu0.b32.cont [10/16] 0.0, 128
        %1352 = vxpose.xlu0.b32.cont [11/16] 0.0, 128
        %1353 = vxpose.xlu0.b32.cont [12/16] 0.0, 128
        %1354 = vxpose.xlu0.b32.cont [13/16] 0.0, 128
        %1355 = vxpose.xlu0.b32.cont [14/16] 0.0, 128
        %1356 = vxpose.xlu0.b32.cont [15/16] 0.0, 128
        %1357 = vxpose.xlu0.b32.end [16/16] 0.0, 128
        %v1358 = vpop.trf.xlu0
        %v1359 = vpop.trf.xlu0
        %v1360 = vpop.trf.xlu0
        %v1361 = vpop.trf.xlu0
        %v1362 = vpop.trf.xlu0
        %v1363 = vpop.trf.xlu0
        %v1364 = vpop.trf.xlu0
        %v1365 = vpop.trf.xlu0
        %v1366 = vpop.trf.xlu0
        %v1367 = vpop.trf.xlu0
        %v1368 = vpop.trf.xlu0
        %v1369 = vpop.trf.xlu0
        %v1370 = vpop.trf.xlu0
        %v1371 = vpop.trf.xlu0
        %v1372 = vpop.trf.xlu0
        %v1373 = vpop.trf.xlu0
        %1378 = vrot.lane.b32.xlu0 %v1358, 8
        %v1379 = vpop.permute.xlu0 %1378
        %1380 = vrot.lane.b32.xlu0 %v1359, 8
        %v1381 = vpop.permute.xlu0 %1380
        %1382 = vrot.lane.b32.xlu0 %v1360, 8
        %v1383 = vpop.permute.xlu0 %1382
        %1384 = vrot.lane.b32.xlu0 %v1361, 8
        %v1385 = vpop.permute.xlu0 %1384
        %1390 = vrot.lane.b32.xlu0 %v1358, 16
        %v1391 = vpop.permute.xlu0 %1390
        %1392 = vrot.lane.b32.xlu0 %v1359, 16
        %v1393 = vpop.permute.xlu0 %1392
        %1394 = vrot.lane.b32.xlu0 %v1360, 16
        %v1395 = vpop.permute.xlu0 %1394
        %1396 = vrot.lane.b32.xlu0 %v1361, 16
        %v1397 = vpop.permute.xlu0 %1396
        %1402 = vrot.lane.b32.xlu0 %v1358, 24
        %v1403 = vpop.permute.xlu0 %1402
        %1404 = vrot.lane.b32.xlu0 %v1359, 24
        %v1405 = vpop.permute.xlu0 %1404
        %1406 = vrot.lane.b32.xlu0 %v1360, 24
        %v1407 = vpop.permute.xlu0 %1406
        %1408 = vrot.lane.b32.xlu0 %v1361, 24
        %v1409 = vpop.permute.xlu0 %1408
        %v1414 = vsel %vm618, %v1358, %v1379
        %v1415 = vsel %vm618, %v1359, %v1381
        %v1416 = vsel %vm618, %v1360, %v1383
        %v1417 = vsel %vm618, %v1361, %v1385
        %v1418 = vsel %vm623, %v1414, %v1391
        %v1419 = vsel %vm623, %v1415, %v1393
        %v1420 = vsel %vm623, %v1416, %v1395
        %v1421 = vsel %vm623, %v1417, %v1397
        %v1422 = vsel %vm628, %v1418, %v1403
        %v1423 = vsel %vm628, %v1419, %v1405
        %v1424 = vsel %vm628, %v1420, %v1407
        %v1425 = vsel %vm628, %v1421, %v1409
        %v1426 = vmul.f32 %v1422, %v455
        %v1427 = vmul.f32 %v1423, %v456
        %v1428 = vmul.f32 %v1424, %v457
        %v1429 = vmul.f32 %v1425, %v458
        %v1430 = vmul.f32 %v1339, %v459
        %v1431 = vmul.f32 %v1339, %v460
        %v1432 = vmul.f32 %v1339, %v461
        %v1433 = vmul.f32 %v1339, %v462
        %v1435 = vsel %vm468, %v1165, 0
        %1437 = vmatprep.subr.mxu0 0.0
        %1438 = vmatpush1.msra.mxu0 %v1426
        %1439 = vmatprep.subr.mxu0 0.0
        %1440 = vmatpush1.msra.mxu0 %v1427
        %1441 = vmatprep.subr.mxu0 0.0
        %1442 = vmatpush1.msra.mxu0 %v1428
        %1443 = vmatprep.subr.mxu0 0.0
        %1444 = vmatpush1.msra.mxu0 %v1429
        %1445 = vmatprep.subr.mxu0 0.0
        %1446 = vmatpush1.msra.mxu0 0.0
        %1447 = vmatprep.subr.mxu0 0.0
        %1448 = vmatpush1.msra.mxu0 0.0
        %1449 = vmatprep.subr.mxu0 0.0
        %1450 = vmatpush1.msra.mxu0 0.0
        %1451 = vmatprep.subr.mxu0 0.0
        %1452 = vmatpush1.msra.mxu0 0.0
        %1453 = vmatprep.subr.mxu0 0.0
        %1454 = vmatpush1.msra.mxu0 0.0
        %1455 = vmatprep.subr.mxu0 0.0
        %1456 = vmatpush1.msra.mxu0 0.0
        %1457 = vmatprep.subr.mxu0 0.0
        %1458 = vmatpush1.msra.mxu0 0.0
        %1459 = vmatprep.subr.mxu0 0.0
        %1460 = vmatpush1.msra.mxu0 0.0
        %1461 = vmatprep.subr.mxu0 0.0
        %1462 = vmatpush1.msra.mxu0 0.0
        %1463 = vmatprep.subr.mxu0 0.0
        %1464 = vmatpush1.msra.mxu0 0.0
        %1465 = vmatprep.subr.mxu0 0.0
        %1466 = vmatpush1.msra.mxu0 0.0
        %1467 = vmatprep.subr.mxu0 0.0
        %1468 = vmatpush1.msra.mxu0 0.0
        %1469 = vmatprep.subr.mxu0 0.0
        %1470 = vmatpush1.msra.mxu0 0.0
        %1471 = vmatprep.subr.mxu0 0.0
        %1472 = vmatpush1.msra.mxu0 0.0
        %1473 = vmatprep.subr.mxu0 0.0
        %1474 = vmatpush1.msra.mxu0 0.0
        %1475 = vmatprep.subr.mxu0 0.0
        %1476 = vmatpush1.msra.mxu0 0.0
        %1477 = vmatprep.subr.mxu0 0.0
        %1478 = vmatpush1.msra.mxu0 0.0
        %1479 = vmatprep.subr.mxu0 0.0
        %1480 = vmatpush1.msra.mxu0 0.0
        %1481 = vmatprep.subr.mxu0 0.0
        %1482 = vmatpush1.msra.mxu0 0.0
        %1483 = vmatprep.subr.mxu0 0.0
        %1484 = vmatpush1.msra.mxu0 0.0
        %1485 = vmatprep.subr.mxu0 0.0
        %1486 = vmatpush1.msra.mxu0 0.0
        %1487 = vmatprep.subr.mxu0 0.0
        %1488 = vmatpush1.msra.mxu0 0.0
        %1489 = vmatprep.subr.mxu0 0.0
        %1490 = vmatpush1.msra.mxu0 0.0
        %1491 = vmatprep.subr.mxu0 0.0
        %1492 = vmatpush1.msra.mxu0 0.0
        %1493 = vmatprep.subr.mxu0 0.0
        %1494 = vmatpush1.msra.mxu0 0.0
        %1495 = vmatprep.subr.mxu0 0.0
        %1496 = vmatpush1.msra.mxu0 0.0
        %1497 = vmatprep.subr.mxu0 0.0
        %1498 = vmatpush1.msra.mxu0 0.0
        %1499 = vmatprep.subr.mxu0 0.0
        %1500 = vmatpush1.msra.mxu0 0.0
        %1501 = vmatprep.mubr.f32.mxu0 0.0
        %1502 = vmatmul.mubr.f32.gmra.mrb[0].mxu0 %v1435
        %v1503 = vpop.f32.mrb[0].mxu0
        %v1504 = vadd.f32 %v427, %v1503
        %v1505 = vpop.f32.mrb[0].mxu0
        %1506 = vdwg.mxu0
        %v1507 = vsel %vm468, %v1504, -inf
        %1508 = vmax.xlane.f32.xlu0 %v1507
        %v1509 = vpop.xlane.xlu0 %1508
        %v1510 = vsub.f32 %v1504, %v1509
        %v1511 = vmul.f32 %v1510, 1.442695
        %v1512 = vpow.pop %v1511
        %v1514 = vsel %vm468, %v1512, 0
        %1516 = vmatprep.subr.mxu0 0.0
        %1517 = vmatpush1.msra.mxu0 %v463
        %1518 = vmatprep.subr.mxu0 0.0
        %1519 = vmatpush1.msra.mxu0 %v464
        %1520 = vmatprep.subr.mxu0 0.0
        %1521 = vmatpush1.msra.mxu0 %v465
        %1522 = vmatprep.subr.mxu0 0.0
        %1523 = vmatpush1.msra.mxu0 %v466
        %1524 = vmatprep.subr.mxu0 0.0
        %1525 = vmatpush1.msra.mxu0 0.0
        %1526 = vmatprep.subr.mxu0 0.0
        %1527 = vmatpush1.msra.mxu0 0.0
        %1528 = vmatprep.subr.mxu0 0.0
        %1529 = vmatpush1.msra.mxu0 0.0
        %1530 = vmatprep.subr.mxu0 0.0
        %1531 = vmatpush1.msra.mxu0 0.0
        %1532 = vmatprep.subr.mxu0 0.0
        %1533 = vmatpush1.msra.mxu0 0.0
        %1534 = vmatprep.subr.mxu0 0.0
        %1535 = vmatpush1.msra.mxu0 0.0
        %1536 = vmatprep.subr.mxu0 0.0
        %1537 = vmatpush1.msra.mxu0 0.0
        %1538 = vmatprep.subr.mxu0 0.0
        %1539 = vmatpush1.msra.mxu0 0.0
        %1540 = vmatprep.subr.mxu0 0.0
        %1541 = vmatpush1.msra.mxu0 0.0
        %1542 = vmatprep.subr.mxu0 0.0
        %1543 = vmatpush1.msra.mxu0 0.0
        %1544 = vmatprep.subr.mxu0 0.0
        %1545 = vmatpush1.msra.mxu0 0.0
        %1546 = vmatprep.subr.mxu0 0.0
        %1547 = vmatpush1.msra.mxu0 0.0
        %1548 = vmatprep.subr.mxu0 0.0
        %1549 = vmatpush1.msra.mxu0 0.0
        %1550 = vmatprep.subr.mxu0 0.0
        %1551 = vmatpush1.msra.mxu0 0.0
        %1552 = vmatprep.subr.mxu0 0.0
        %1553 = vmatpush1.msra.mxu0 0.0
        %1554 = vmatprep.subr.mxu0 0.0
        %1555 = vmatpush1.msra.mxu0 0.0
        %1556 = vmatprep.subr.mxu0 0.0
        %1557 = vmatpush1.msra.mxu0 0.0
        %1558 = vmatprep.subr.mxu0 0.0
        %1559 = vmatpush1.msra.mxu0 0.0
        %1560 = vmatprep.subr.mxu0 0.0
        %1561 = vmatpush1.msra.mxu0 0.0
        %1562 = vmatprep.subr.mxu0 0.0
        %1563 = vmatpush1.msra.mxu0 0.0
        %1564 = vmatprep.subr.mxu0 0.0
        %1565 = vmatpush1.msra.mxu0 0.0
        %1566 = vmatprep.subr.mxu0 0.0
        %1567 = vmatpush1.msra.mxu0 0.0
        %1568 = vmatprep.subr.mxu0 0.0
        %1569 = vmatpush1.msra.mxu0 0.0
        %1570 = vmatprep.subr.mxu0 0.0
        %1571 = vmatpush1.msra.mxu0 0.0
        %1572 = vmatprep.subr.mxu0 0.0
        %1573 = vmatpush1.msra.mxu0 0.0
        %1574 = vmatprep.subr.mxu0 0.0
        %1575 = vmatpush1.msra.mxu0 0.0
        %1576 = vmatprep.subr.mxu0 0.0
        %1577 = vmatpush1.msra.mxu0 0.0
        %1578 = vmatprep.subr.mxu0 0.0
        %1579 = vmatpush1.msra.mxu0 0.0
        %1580 = vmatprep.mubr.f32.mxu0 0.0
        %1581 = vmatmul.mubr.f32.gmra.mrb[0].mxu0 %v1514
        %v1582 = vpop.f32.mrb[0].mxu0
        %v1583 = vadd.f32 0.0, %v1582
        %v1584 = vpop.f32.mrb[0].mxu0
        %1585 = vdwg.mxu0
        %v1587 = vsel %vm808, %v1583, 0
        %v1590 = vsel %vm812, %v467, 0
        %1592 = vmatprep.subr.mxu0 0.0
        %1593 = vmatpush1.msra.mxu0 %v1590
        %1594 = vmatprep.subr.mxu0 0.0
        %1595 = vmatpush1.msra.mxu0 0.0
        %1596 = vmatprep.subr.mxu0 0.0
        %1597 = vmatpush1.msra.mxu0 0.0
        %1598 = vmatprep.subr.mxu0 0.0
        %1599 = vmatpush1.msra.mxu0 0.0
        %1600 = vmatprep.subr.mxu0 0.0
        %1601 = vmatpush1.msra.mxu0 0.0
        %1602 = vmatprep.subr.mxu0 0.0
        %1603 = vmatpush1.msra.mxu0 0.0
        %1604 = vmatprep.subr.mxu0 0.0
        %1605 = vmatpush1.msra.mxu0 0.0
        %1606 = vmatprep.subr.mxu0 0.0
        %1607 = vmatpush1.msra.mxu0 0.0
        %1608 = vmatprep.subr.mxu0 0.0
        %1609 = vmatpush1.msra.mxu0 0.0
        %1610 = vmatprep.subr.mxu0 0.0
        %1611 = vmatpush1.msra.mxu0 0.0
        %1612 = vmatprep.subr.mxu0 0.0
        %1613 = vmatpush1.msra.mxu0 0.0
        %1614 = vmatprep.subr.mxu0 0.0
        %1615 = vmatpush1.msra.mxu0 0.0
        %1616 = vmatprep.subr.mxu0 0.0
        %1617 = vmatpush1.msra.mxu0 0.0
        %1618 = vmatprep.subr.mxu0 0.0
        %1619 = vmatpush1.msra.mxu0 0.0
        %1620 = vmatprep.subr.mxu0 0.0
        %1621 = vmatpush1.msra.mxu0 0.0
        %1622 = vmatprep.subr.mxu0 0.0
        %1623 = vmatpush1.msra.mxu0 0.0
        %1624 = vmatprep.subr.mxu0 0.0
        %1625 = vmatpush1.msra.mxu0 0.0
        %1626 = vmatprep.subr.mxu0 0.0
        %1627 = vmatpush1.msra.mxu0 0.0
        %1628 = vmatprep.subr.mxu0 0.0
        %1629 = vmatpush1.msra.mxu0 0.0
        %1630 = vmatprep.subr.mxu0 0.0
        %1631 = vmatpush1.msra.mxu0 0.0
        %1632 = vmatprep.subr.mxu0 0.0
        %1633 = vmatpush1.msra.mxu0 0.0
        %1634 = vmatprep.subr.mxu0 0.0
        %1635 = vmatpush1.msra.mxu0 0.0
        %1636 = vmatprep.subr.mxu0 0.0
        %1637 = vmatpush1.msra.mxu0 0.0
        %1638 = vmatprep.subr.mxu0 0.0
        %1639 = vmatpush1.msra.mxu0 0.0
        %1640 = vmatprep.subr.mxu0 0.0
        %1641 = vmatpush1.msra.mxu0 0.0
        %1642 = vmatprep.subr.mxu0 0.0
        %1643 = vmatpush1.msra.mxu0 0.0
        %1644 = vmatprep.subr.mxu0 0.0
        %1645 = vmatpush1.msra.mxu0 0.0
        %1646 = vmatprep.subr.mxu0 0.0
        %1647 = vmatpush1.msra.mxu0 0.0
        %1648 = vmatprep.subr.mxu0 0.0
        %1649 = vmatpush1.msra.mxu0 0.0
        %1650 = vmatprep.subr.mxu0 0.0
        %1651 = vmatpush1.msra.mxu0 0.0
        %1652 = vmatprep.subr.mxu0 0.0
        %1653 = vmatpush1.msra.mxu0 0.0
        %1654 = vmatprep.subr.mxu0 0.0
        %1655 = vmatpush1.msra.mxu0 0.0
        %1656 = vmatprep.mubr.f32.mxu0 0.0
        %1657 = vmatmul.mubr.f32.gmra.mrb[0].mxu0 %v1587
        %v1658 = vpop.f32.mrb[0].mxu0
        %v1659 = vadd.f32 0.0, %v1658
        %v1660 = vpop.f32.mrb[0].mxu0
        %1661 = vdwg.mxu0
        %v1662 = vrcp.pop %v1659
        %v1663 = vmul.f32 %v1512, %v1662
        %v1665 = vsel %vm468, %v1663, 0
        %1667 = vmatprep.subr.mxu0 0.0
        %1668 = vmatpush1.msra.mxu0 %v1430
        %1669 = vmatprep.subr.mxu0 0.0
        %1670 = vmatpush1.msra.mxu0 %v1431
        %1671 = vmatprep.subr.mxu0 0.0
        %1672 = vmatpush1.msra.mxu0 %v1432
        %1673 = vmatprep.subr.mxu0 0.0
        %1674 = vmatpush1.msra.mxu0 %v1433
        %1675 = vmatprep.subr.mxu0 0.0
        %1676 = vmatpush1.msra.mxu0 0.0
        %1677 = vmatprep.subr.mxu0 0.0
        %1678 = vmatpush1.msra.mxu0 0.0
        %1679 = vmatprep.subr.mxu0 0.0
        %1680 = vmatpush1.msra.mxu0 0.0
        %1681 = vmatprep.subr.mxu0 0.0
        %1682 = vmatpush1.msra.mxu0 0.0
        %1683 = vmatprep.subr.mxu0 0.0
        %1684 = vmatpush1.msra.mxu0 0.0
        %1685 = vmatprep.subr.mxu0 0.0
        %1686 = vmatpush1.msra.mxu0 0.0
        %1687 = vmatprep.subr.mxu0 0.0
        %1688 = vmatpush1.msra.mxu0 0.0
        %1689 = vmatprep.subr.mxu0 0.0
        %1690 = vmatpush1.msra.mxu0 0.0
        %1691 = vmatprep.subr.mxu0 0.0
        %1692 = vmatpush1.msra.mxu0 0.0
        %1693 = vmatprep.subr.mxu0 0.0
        %1694 = vmatpush1.msra.mxu0 0.0
        %1695 = vmatprep.subr.mxu0 0.0
        %1696 = vmatpush1.msra.mxu0 0.0
        %1697 = vmatprep.subr.mxu0 0.0
        %1698 = vmatpush1.msra.mxu0 0.0
        %1699 = vmatprep.subr.mxu0 0.0
        %1700 = vmatpush1.msra.mxu0 0.0
        %1701 = vmatprep.subr.mxu0 0.0
        %1702 = vmatpush1.msra.mxu0 0.0
        %1703 = vmatprep.subr.mxu0 0.0
        %1704 = vmatpush1.msra.mxu0 0.0
        %1705 = vmatprep.subr.mxu0 0.0
        %1706 = vmatpush1.msra.mxu0 0.0
        %1707 = vmatprep.subr.mxu0 0.0
        %1708 = vmatpush1.msra.mxu0 0.0
        %1709 = vmatprep.subr.mxu0 0.0
        %1710 = vmatpush1.msra.mxu0 0.0
        %1711 = vmatprep.subr.mxu0 0.0
        %1712 = vmatpush1.msra.mxu0 0.0
        %1713 = vmatprep.subr.mxu0 0.0
        %1714 = vmatpush1.msra.mxu0 0.0
        %1715 = vmatprep.subr.mxu0 0.0
        %1716 = vmatpush1.msra.mxu0 0.0
        %1717 = vmatprep.subr.mxu0 0.0
        %1718 = vmatpush1.msra.mxu0 0.0
        %1719 = vmatprep.subr.mxu0 0.0
        %1720 = vmatpush1.msra.mxu0 0.0
        %1721 = vmatprep.subr.mxu0 0.0
        %1722 = vmatpush1.msra.mxu0 0.0
        %1723 = vmatprep.subr.mxu0 0.0
        %1724 = vmatpush1.msra.mxu0 0.0
        %1725 = vmatprep.subr.mxu0 0.0
        %1726 = vmatpush1.msra.mxu0 0.0
        %1727 = vmatprep.subr.mxu0 0.0
        %1728 = vmatpush1.msra.mxu0 0.0
        %1729 = vmatprep.subr.mxu0 0.0
        %1730 = vmatpush1.msra.mxu0 0.0
        %1731 = vmatprep.mubr.f32.mxu0 0.0
        %1732 = vmatmul.mubr.f32.gmra.mrb[0].mxu0 %v1665
        %v1733 = vpop.f32.mrb[0].mxu0
        %v1734 = vadd.f32 0.0, %v1733
        %v1735 = vpop.f32.mrb[0].mxu0
        %1736 = vdwg.mxu0
        %v1737 = vlaneseq
        %v1738 = vshrl.u32 %v1737, 7
        %v1739 = vsub.s32 3, %v1738
        %v1740 = vrot.slane %v440, %v1739
        %1741 = vrot.lane.b32.xlu0 %v429, 32
        %v1742 = vpop.permute.xlu0 %1741
        %1743 = vrot.lane.b32.xlu0 %v432, 32
        %v1744 = vpop.permute.xlu0 %1743
        %1745 = vrot.lane.b32.xlu0 %v435, 32
        %v1746 = vpop.permute.xlu0 %1745
        %1747 = vrot.lane.b32.xlu0 %v438, 32
        %v1748 = vpop.permute.xlu0 %1747
        %v1754 = vsel %vm468, %v1734, 0
        %1756 = vmatprep.subr.mxu0 0.0
        %1757 = vmatpush1.msra.mxu0 %v1742
        %1758 = vmatprep.subr.mxu0 0.0
        %1759 = vmatpush1.msra.mxu0 %v1744
        %1760 = vmatprep.subr.mxu0 0.0
        %1761 = vmatpush1.msra.mxu0 %v1746
        %1762 = vmatprep.subr.mxu0 0.0
        %1763 = vmatpush1.msra.mxu0 %v1748
        %1764 = vmatprep.subr.mxu0 0.0
        %1765 = vmatpush1.msra.mxu0 0.0
        %1766 = vmatprep.subr.mxu0 0.0
        %1767 = vmatpush1.msra.mxu0 0.0
        %1768 = vmatprep.subr.mxu0 0.0
        %1769 = vmatpush1.msra.mxu0 0.0
        %1770 = vmatprep.subr.mxu0 0.0
        %1771 = vmatpush1.msra.mxu0 0.0
        %1772 = vmatprep.subr.mxu0 0.0
        %1773 = vmatpush1.msra.mxu0 0.0
        %1774 = vmatprep.subr.mxu0 0.0
        %1775 = vmatpush1.msra.mxu0 0.0
        %1776 = vmatprep.subr.mxu0 0.0
        %1777 = vmatpush1.msra.mxu0 0.0
        %1778 = vmatprep.subr.mxu0 0.0
        %1779 = vmatpush1.msra.mxu0 0.0
        %1780 = vmatprep.subr.mxu0 0.0
        %1781 = vmatpush1.msra.mxu0 0.0
        %1782 = vmatprep.subr.mxu0 0.0
        %1783 = vmatpush1.msra.mxu0 0.0
        %1784 = vmatprep.subr.mxu0 0.0
        %1785 = vmatpush1.msra.mxu0 0.0
        %1786 = vmatprep.subr.mxu0 0.0
        %1787 = vmatpush1.msra.mxu0 0.0
        %1788 = vmatprep.subr.mxu0 0.0
        %1789 = vmatpush1.msra.mxu0 0.0
        %1790 = vmatprep.subr.mxu0 0.0
        %1791 = vmatpush1.msra.mxu0 0.0
        %1792 = vmatprep.subr.mxu0 0.0
        %1793 = vmatpush1.msra.mxu0 0.0
        %1794 = vmatprep.subr.mxu0 0.0
        %1795 = vmatpush1.msra.mxu0 0.0
        %1796 = vmatprep.subr.mxu0 0.0
        %1797 = vmatpush1.msra.mxu0 0.0
        %1798 = vmatprep.subr.mxu0 0.0
        %1799 = vmatpush1.msra.mxu0 0.0
        %1800 = vmatprep.subr.mxu0 0.0
        %1801 = vmatpush1.msra.mxu0 0.0
        %1802 = vmatprep.subr.mxu0 0.0
        %1803 = vmatpush1.msra.mxu0 0.0
        %1804 = vmatprep.subr.mxu0 0.0
        %1805 = vmatpush1.msra.mxu0 0.0
        %1806 = vmatprep.subr.mxu0 0.0
        %1807 = vmatpush1.msra.mxu0 0.0
        %1808 = vmatprep.subr.mxu0 0.0
        %1809 = vmatpush1.msra.mxu0 0.0
        %1810 = vmatprep.subr.mxu0 0.0
        %1811 = vmatpush1.msra.mxu0 0.0
        %1812 = vmatprep.subr.mxu0 0.0
        %1813 = vmatpush1.msra.mxu0 0.0
        %1814 = vmatprep.subr.mxu0 0.0
        %1815 = vmatpush1.msra.mxu0 0.0
        %1816 = vmatprep.subr.mxu0 0.0
        %1817 = vmatpush1.msra.mxu0 0.0
        %1818 = vmatprep.subr.mxu0 0.0
        %1819 = vmatpush1.msra.mxu0 0.0
        %1820 = vmatprep.mubr.f32.mxu0 0.0
        %1821 = vmatmul.mubr.f32.gmra.mrb[0].mxu0 %v1754
        %v1822 = vpop.f32.mrb[0].mxu0
        %v1823 = vadd.f32 %v1740, %v1822
        %v1824 = vpop.f32.mrb[0].mxu0
        %1825 = vdwg.mxu0
        %v1826 = vadd.f32 %v1823, %v1094
        %v1827 = vsel %vm468, %v1826, 0.0
        %1828 = vadd.xlane.f32.xlu0 %v1827
        %v1829 = vpop.xlane.xlu0 %1828
        %v1830 = vmul.f32 %v1829, %v1074
        %v1831 = vsub.f32 %v1826, %v1830
        %v1832 = vmul.f32 %v1831, %v1831
        %v1833 = vsel %vm468, %v1832, 0.0
        %1834 = vadd.xlane.f32.xlu0 %v1833
        %v1835 = vpop.xlane.xlu0 %1834
        %v1836 = vmul.f32 %v1835, %v1074
        %v1837 = vadd.f32 %v1836, 1e-05
        %v1838 = vrsqrt.pop %v1837
        %v1839 = vmul.f32 %v1831, %v1838
        %v1840 = vlaneseq
        %v1841 = vshrl.u32 %v1840, 7
        %v1842 = vsub.s32 4, %v1841
        %v1843 = vrot.slane %v440, %v1842
        %v1844 = vmul.f32 %v1839, %v1843
        %v1845 = vlaneseq
        %v1846 = vshrl.u32 %v1845, 7
        %v1847 = vsub.s32 5, %v1846
        %v1848 = vrot.slane %v440, %v1847
        %v1849 = vadd.f32 %v1844, %v1848
        %v1850 = vlaneseq
        %v1851 = vshrl.u32 %v1850, 7
        %v1852 = vsub.s32 1, %v1851
        %v1853 = vrot.slane %v441, %v1852
        %v1855 = vsel %vm468, %v1849, 0
        %1857 = vmatprep.subr.mxu0 0.0
        %1858 = vmatpush1.msra.mxu0 %v430
        %1859 = vmatprep.subr.mxu0 0.0
        %1860 = vmatpush1.msra.mxu0 %v433
        %1861 = vmatprep.subr.mxu0 0.0
        %1862 = vmatpush1.msra.mxu0 %v436
        %1863 = vmatprep.subr.mxu0 0.0
        %1864 = vmatpush1.msra.mxu0 %v439
        %1865 = vmatprep.subr.mxu0 0.0
        %1866 = vmatpush1.msra.mxu0 0.0
        %1867 = vmatprep.subr.mxu0 0.0
        %1868 = vmatpush1.msra.mxu0 0.0
        %1869 = vmatprep.subr.mxu0 0.0
        %1870 = vmatpush1.msra.mxu0 0.0
        %1871 = vmatprep.subr.mxu0 0.0
        %1872 = vmatpush1.msra.mxu0 0.0
        %1873 = vmatprep.subr.mxu0 0.0
        %1874 = vmatpush1.msra.mxu0 0.0
        %1875 = vmatprep.subr.mxu0 0.0
        %1876 = vmatpush1.msra.mxu0 0.0
        %1877 = vmatprep.subr.mxu0 0.0
        %1878 = vmatpush1.msra.mxu0 0.0
        %1879 = vmatprep.subr.mxu0 0.0
        %1880 = vmatpush1.msra.mxu0 0.0
        %1881 = vmatprep.subr.mxu0 0.0
        %1882 = vmatpush1.msra.mxu0 0.0
        %1883 = vmatprep.subr.mxu0 0.0
        %1884 = vmatpush1.msra.mxu0 0.0
        %1885 = vmatprep.subr.mxu0 0.0
        %1886 = vmatpush1.msra.mxu0 0.0
        %1887 = vmatprep.subr.mxu0 0.0
        %1888 = vmatpush1.msra.mxu0 0.0
        %1889 = vmatprep.subr.mxu0 0.0
        %1890 = vmatpush1.msra.mxu0 0.0
        %1891 = vmatprep.subr.mxu0 0.0
        %1892 = vmatpush1.msra.mxu0 0.0
        %1893 = vmatprep.subr.mxu0 0.0
        %1894 = vmatpush1.msra.mxu0 0.0
        %1895 = vmatprep.subr.mxu0 0.0
        %1896 = vmatpush1.msra.mxu0 0.0
        %1897 = vmatprep.subr.mxu0 0.0
        %1898 = vmatpush1.msra.mxu0 0.0
        %1899 = vmatprep.subr.mxu0 0.0
        %1900 = vmatpush1.msra.mxu0 0.0
        %1901 = vmatprep.subr.mxu0 0.0
        %1902 = vmatpush1.msra.mxu0 0.0
        %1903 = vmatprep.subr.mxu0 0.0
        %1904 = vmatpush1.msra.mxu0 0.0
        %1905 = vmatprep.subr.mxu0 0.0
        %1906 = vmatpush1.msra.mxu0 0.0
        %1907 = vmatprep.subr.mxu0 0.0
        %1908 = vmatpush1.msra.mxu0 0.0
        %1909 = vmatprep.subr.mxu0 0.0
        %1910 = vmatpush1.msra.mxu0 0.0
        %1911 = vmatprep.subr.mxu0 0.0
        %1912 = vmatpush1.msra.mxu0 0.0
        %1913 = vmatprep.subr.mxu0 0.0
        %1914 = vmatpush1.msra.mxu0 0.0
        %1915 = vmatprep.subr.mxu0 0.0
        %1916 = vmatpush1.msra.mxu0 0.0
        %1917 = vmatprep.subr.mxu0 0.0
        %1918 = vmatpush1.msra.mxu0 0.0
        %1919 = vmatprep.subr.mxu0 0.0
        %1920 = vmatpush1.msra.mxu0 0.0
        %1921 = vmatprep.mubr.f32.mxu0 0.0
        %1922 = vmatmul.mubr.f32.gmra.mrb[0].mxu0 %v1855
        %v1923 = vpop.f32.mrb[0].mxu0
        %v1924 = vadd.f32 %v1853, %v1923
        %v1925 = vpop.f32.mrb[0].mxu0
        %1926 = vdwg.mxu0
        %v1927 = vmax.f32 %v1924, 0.0
        %v1928 = vld [vmem:[%s6] sm:$0xff]
        %v1929 = vld [vmem:[%s6 + $0x8] sm:$0xff]
        %v1930 = vld [vmem:[%s6 + $0x10] sm:$0xff]
        %v1931 = vld [vmem:[%s6 + $0x18] sm:$0xff]
        %v1932 = vld [vmem:[%s6 + $0x20] sm:$0xff]
        %v1933 = vld [vmem:[%s6 + $0x28] sm:$0xff]
        %v1934 = vld [vmem:[%s6 + $0x30] sm:$0xff]
        %v1935 = vld [vmem:[%s6 + $0x38] sm:$0xff]
        %v1936 = vld [vmem:[%s6 + $0x40] sm:$0xff]
        %v1937 = vld [vmem:[%s6 + $0x48] sm:$0xff]
        %v1938 = vld [vmem:[%s6 + $0x50] sm:$0xff]
        %v1939 = vld [vmem:[%s6 + $0x58] sm:$0xff]
        %v1940 = vld [vmem:[%s6 + $0x60] sm:$0xff]
        %v1941 = vld [vmem:[%s6 + $0x68] sm:$0xff]
        %v1942 = vld [vmem:[%s6 + $0x70] sm:$0xff]
        %v1943 = vld [vmem:[%s6 + $0x78] sm:$0xff]
        %v1944 = vlaneseq
        %v1945 = vshrl.u32 %v1944, 7
        %v1946 = vsub.s32 0, %v1945
        %v1947 = vrot.slane %v441, %v1946
        %1948 = vmatprep.subr.mxu0 0.0
        %1949 = vmatpush1.msra.mxu0 %v1928
        %1950 = vmatprep.subr.mxu0 0.0
        %1951 = vmatpush1.msra.mxu0 %v1929
        %1952 = vmatprep.subr.mxu0 0.0
        %1953 = vmatpush1.msra.mxu0 %v1930
        %1954 = vmatprep.subr.mxu0 0.0
        %1955 = vmatpush1.msra.mxu0 %v1931
        %1956 = vmatprep.subr.mxu0 0.0
        %1957 = vmatpush1.msra.mxu0 %v1932
        %1958 = vmatprep.subr.mxu0 0.0
        %1959 = vmatpush1.msra.mxu0 %v1933
        %1960 = vmatprep.subr.mxu0 0.0
        %1961 = vmatpush1.msra.mxu0 %v1934
        %1962 = vmatprep.subr.mxu0 0.0
        %1963 = vmatpush1.msra.mxu0 %v1935
        %1964 = vmatprep.subr.mxu0 0.0
        %1965 = vmatpush1.msra.mxu0 %v1936
        %1966 = vmatprep.subr.mxu0 0.0
        %1967 = vmatpush1.msra.mxu0 %v1937
        %1968 = vmatprep.subr.mxu0 0.0
        %1969 = vmatpush1.msra.mxu0 %v1938
        %1970 = vmatprep.subr.mxu0 0.0
        %1971 = vmatpush1.msra.mxu0 %v1939
        %1972 = vmatprep.subr.mxu0 0.0
        %1973 = vmatpush1.msra.mxu0 %v1940
        %1974 = vmatprep.subr.mxu0 0.0
        %1975 = vmatpush1.msra.mxu0 %v1941
        %1976 = vmatprep.subr.mxu0 0.0
        %1977 = vmatpush1.msra.mxu0 %v1942
        %1978 = vmatprep.subr.mxu0 0.0
        %1979 = vmatpush1.msra.mxu0 %v1943
        %1980 = vmatprep.subr.mxu0 0.0
        %1981 = vmatpush1.msra.mxu0 0.0
        %1982 = vmatprep.subr.mxu0 0.0
        %1983 = vmatpush1.msra.mxu0 0.0
        %1984 = vmatprep.subr.mxu0 0.0
        %1985 = vmatpush1.msra.mxu0 0.0
        %1986 = vmatprep.subr.mxu0 0.0
        %1987 = vmatpush1.msra.mxu0 0.0
        %1988 = vmatprep.subr.mxu0 0.0
        %1989 = vmatpush1.msra.mxu0 0.0
        %1990 = vmatprep.subr.mxu0 0.0
        %1991 = vmatpush1.msra.mxu0 0.0
        %1992 = vmatprep.subr.mxu0 0.0
        %1993 = vmatpush1.msra.mxu0 0.0
        %1994 = vmatprep.subr.mxu0 0.0
        %1995 = vmatpush1.msra.mxu0 0.0
        %1996 = vmatprep.subr.mxu0 0.0
        %1997 = vmatpush1.msra.mxu0 0.0
        %1998 = vmatprep.subr.mxu0 0.0
        %1999 = vmatpush1.msra.mxu0 0.0
        %2000 = vmatprep.subr.mxu0 0.0
        %2001 = vmatpush1.msra.mxu0 0.0
        %2002 = vmatprep.subr.mxu0 0.0
        %2003 = vmatpush1.msra.mxu0 0.0
        %2004 = vmatprep.subr.mxu0 0.0
        %2005 = vmatpush1.msra.mxu0 0.0
        %2006 = vmatprep.subr.mxu0 0.0
        %2007 = vmatpush1.msra.mxu0 0.0
        %2008 = vmatprep.subr.mxu0 0.0
        %2009 = vmatpush1.msra.mxu0 0.0
        %2010 = vmatprep.subr.mxu0 0.0
        %2011 = vmatpush1.msra.mxu0 0.0
        %2012 = vmatprep.mubr.f32.mxu0 0.0
        %2013 = vmatmul.mubr.f32.gmra.mrb[0].mxu0 %v1927
        %v2014 = vpop.f32.mrb[0].mxu0
        %v2015 = vadd.f32 %v1947, %v2014
        %v2016 = vpop.f32.mrb[0].mxu0
        %2017 = vdwg.mxu0
        %v2018 = vadd.f32 %v2015, %v1849
        %v2019 = vsel %vm468, %v2018, 0.0
        %2020 = vadd.xlane.f32.xlu0 %v2019
        %v2021 = vpop.xlane.xlu0 %2020
        %v2022 = vmul.f32 %v2021, %v1074
        %v2023 = vsub.f32 %v2018, %v2022
        %v2024 = vmul.f32 %v2023, %v2023
        %v2025 = vsel %vm468, %v2024, 0.0
        %2026 = vadd.xlane.f32.xlu0 %v2025
        %v2027 = vpop.xlane.xlu0 %2026
        %v2028 = vmul.f32 %v2027, %v1074
        %v2029 = vadd.f32 %v2028, 1e-05
        %v2030 = vrsqrt.pop %v2029
        %v2031 = vmul.f32 %v2023, %v2030
        %v2032 = vlaneseq
        %v2033 = vshrl.u32 %v2032, 7
        %v2034 = vsub.s32 6, %v2033
        %v2035 = vrot.slane %v440, %v2034
        %v2036 = vmul.f32 %v2031, %v2035
        %v2037 = vlaneseq
        %v2038 = vshrl.u32 %v2037, 7
        %v2039 = vsub.s32 7, %v2038
        %v2040 = vrot.slane %v440, %v2039
        %v2041 = vadd.f32 %v2036, %v2040
        %2042 = vst.msk [vmem:[%s402] sm:$0xff] %vm468, %v2041
        %s2043 = sand.u32 %s267, 1
        %s2044 = scalar_lea.sflag [#allocation3], %s2043
        %s2045 = sand.u32 %s267, 1
        %s2046 = smul.addr %s2045, 8
        %s2047 = scalar_lea.vmem [#allocation2], %s2046
        // Predicated region
        $region61: #{tpu_custom_call.1} parent=59 // pred_check
          %p2048 = pneg %p277
        $region62: #{tpu_custom_call.1} parent=59 // pred_check_branch
          %2050 = sbr.rel (%p2048) target = $region64
        $region63: #{tpu_custom_call.1} parent=59 // pred_region
          %s2052 = ssub.s32 128, 128
          %2053 = vsyncadd %s2044, %s2052
          %s2054 = smul.addr %s24, 128
          %s2055 = scalar_lea.hbm %s10, %s2054
          %s2057 = sshll.u32 %s2047, 4
          %s2058 = int_to_ptr.vmem [resolvable:$true] %s2057
          %2060 = dma.vmem_to_hbm [thread:$0]  %s2058, 128, %s2055, %s2044
        $region64: #{tpu_custom_call.1} parent=59 // pred_fallthru
          _
      $region60: #{tpu_custom_call.1} parent=5 // pred_fallthru
        _
      %p2061 = scmp.le.s32.totalorder 2, %s19
      // Predicated region
      $region65: #{tpu_custom_call.1} parent=5 // pred_check
        %p2062 = pneg %p2061
      $region66: #{tpu_custom_call.1} parent=5 // pred_check_branch
        %2064 = sbr.rel (%p2062) target = $region68
      $region67: #{tpu_custom_call.1} parent=5 // pred_region
        %s2065 = ssub.s32 %s19, 2
        // Predicated region
        $region69: #{tpu_custom_call.1} parent=67 // pred_check
          %p2066 = pneg %p283
        $region70: #{tpu_custom_call.1} parent=67 // pred_check_branch
          %2068 = sbr.rel (%p2066) target = $region72
        $region71: #{tpu_custom_call.1} parent=67 // pred_region
          %s2069 = sand.u32 %s268, 1
          %s2070 = scalar_lea.sflag [#allocation3], %s2069
          %s2071 = sand.u32 %s268, 1
          %s2072 = smul.addr %s2071, 8
          %s2073 = scalar_lea.vmem [#allocation2], %s2072
          %2074 = dma.done %s2070, 128
        $region72: #{tpu_custom_call.1} parent=67 // pred_fallthru
          _
      $region68: #{tpu_custom_call.1} parent=5 // pred_fallthru
        _
    $region6: #{tpu_custom_call.1} parent=1 // loop_footer
      %s23 = sadd.s32 1, %s19
    $region7: #{tpu_custom_call.1} parent=1 // loop_footer_branch
      %18 = sbr.rel target = $region3
    $region8: #{tpu_custom_call.1} parent=1 // loop_exit
      _
    %2075 = vsyncpa [#allocation3], 1
    %s2076 = scalar_lea.sflag [#allocation3], 1
    %2077 = vsyncpa %s2076, 1

</llo_original>
